<compile_context>
chip_gen: v5e
topology: v5e:2x2
jax: 0.10.0
libtpu: 0.0.40
codegen_flags: <defaults>
</compile_context>

<pallas_src>
import functools

import jax
import jax.numpy as jnp
import numpy as np
from jax.experimental import pallas as pl
from jax.experimental.pallas import tpu as pltpu


# ---------------------------------------------------------------------------
# getContrast
#   vis_emb (fusion_fs): (A, V, D)   A = images, V = anchors per image
#   lan_emb (lan_fs)   : (B, 1, D)   B = sentences, A == B
#   sim[b, a, v] = <lan[b], vis[a, v]>
#   logits_b = [max_v sim[b,a,:]  for a]  ++  [2nd-max_v sim[b,a,:] for a != b]
#   loss = mean_b CE(logits_b, target=b)
#
# Grid tiles the image axis A (reduction, "arbitrary").  lan is one resident
# (B, D) block.  Per image: one (B,D)x(D,V) bf16 matmul, vectorized top-2 over
# the V lane axis, then an online logsumexp update in (B,1) VMEM scratch.
# ---------------------------------------------------------------------------
def _contrast_kernel(lan_ref, vis_ref, loss_ref, m_sc, s_sc, c_sc, *,
                     block_a, inv_b):
    t = pl.program_id(0)
    B = lan_ref.shape[0]
    neg_inf = jnp.float32(-jnp.inf)

    @pl.when(t == 0)
    def _():
        m_sc[...] = jnp.full_like(m_sc, -jnp.inf)   # running max of logits
        s_sc[...] = jnp.zeros_like(s_sc)            # running sum of exp
        c_sc[...] = jnp.zeros_like(c_sc)            # logit of the target class

    lan_bf = lan_ref[...].astype(jnp.bfloat16)                      # (B, D)
    row = jax.lax.broadcasted_iota(jnp.int32, (B, 1), 0)            # sentence idx b

    # Static unroll over the anchor images inside this tile (amortizes the
    # per-grid-step overhead; each iteration is still one full-width matmul).
    for i in range(block_a):
        a = t * block_a + i                                         # global image idx
        vis_i = vis_ref[i].astype(jnp.bfloat16)                     # (V, D)
        # (B, D) x (V, D)^T -> (B, V), bf16 MXU, f32 accumulation.
        sim = jax.lax.dot_general(
            lan_bf, vis_i, (((1,), (1,)), ((), ())),
            preferred_element_type=jnp.float32)
        V = sim.shape[1]
        lane = jax.lax.broadcasted_iota(jnp.int32, sim.shape, 1)

        m0 = jnp.max(sim, axis=1, keepdims=True)                    # (B, 1)
        # first occurrence of the max (matches top_k / torch tie semantics)
        first = jnp.min(jnp.where(sim == m0, lane, V), axis=1, keepdims=True)
        m1 = jnp.max(jnp.where(lane == first, neg_inf, sim),
                     axis=1, keepdims=True)                         # (B, 1)

        is_diag = (row == a)                                        # (B, 1) bool
        # second-max of the matching image is excluded from the logits
        m1 = jnp.where(is_diag, neg_inf, m1)

        # online logsumexp update
        m_prev = m_sc[...]
        m_new = jnp.maximum(m_prev, jnp.maximum(m0, m1))
        s_sc[...] = (s_sc[...] * jnp.exp(m_prev - m_new)
                     + jnp.exp(m0 - m_new) + jnp.exp(m1 - m_new))
        c_sc[...] = c_sc[...] + jnp.where(is_diag, m0, 0.0)         # target logit m0[b,b]
        m_sc[...] = m_new

    @pl.when(t == pl.num_programs(0) - 1)
    def _():
        loss_rows = (m_sc[...] + jnp.log(s_sc[...])) - c_sc[...]    # (B, 1)
        loss_ref[...] = jnp.sum(loss_rows, axis=0, keepdims=True) * jnp.float32(inv_b)


def get_contrast(fusion_fs, lan_fs, block_a=None):
    A, V, D = fusion_fs.shape
    B, Q, D2 = lan_fs.shape
    assert Q == 1 and A == B and D == D2

    if block_a is None:
        block_a = next(bt for bt in (8, 4, 2, 1) if A % bt == 0)
    assert A % block_a == 0

    lan2d = lan_fs.reshape(B, D)  # squeeze the query dim outside the kernel

    kernel = functools.partial(_contrast_kernel, block_a=block_a, inv_b=1.0 / B)
    loss = pl.pallas_call(
        kernel,
        out_shape=jax.ShapeDtypeStruct((1, 1), jnp.float32),
        grid_spec=pltpu.PrefetchScalarGridSpec(
            num_scalar_prefetch=0,
            grid=(A // block_a,),
            in_specs=[
                # language embeddings: constant block index -> stays VMEM-resident
                pl.BlockSpec((B, D), lambda t: (0, 0)),
                # visual embeddings: streamed / pipelined tile of anchor images
                pl.BlockSpec((block_a, V, D), lambda t: (t, 0, 0)),
            ],
            out_specs=pl.BlockSpec((1, 1), lambda t: (0, 0)),
            scratch_shapes=[pltpu.VMEM((B, 1), jnp.float32)] * 3,
        ),
        compiler_params=pltpu.CompilerParams(
            dimension_semantics=("arbitrary",),   # grid axis carries the online LSE
        ),
    )(lan2d, fusion_fs)
    return loss[0, 0]


# ---------------------------------------------------------------------------
# getPrediction
#   vis_emb (fusion_fs): (B, K, D)
#   lan_emb (lan_fs)   : (B, Y, D)
#   sim[b, y, k] = <lan[b, y], vis[b, k]>;  output = one-hot(argmax_k) as bool
# Grid tiles the batch ("parallel"), several images per step; int8 one-hot out.
# ---------------------------------------------------------------------------
def _prediction_kernel(vis_ref, lan_ref, out_ref):
    vis = vis_ref[...].astype(jnp.bfloat16)      # (Bt, K, D)
    lan = lan_ref[...].astype(jnp.bfloat16)      # (Bt, Y, D)
    sim = jnp.einsum('byd,bkd->byk', lan, vis,
                     preferred_element_type=jnp.float32)             # (Bt, Y, K)
    K = sim.shape[2]
    lane = jax.lax.broadcasted_iota(jnp.int32, sim.shape, 2)
    maxv = jnp.max(sim, axis=2, keepdims=True)
    first = jnp.min(jnp.where(sim == maxv, lane, K), axis=2, keepdims=True)
    out_ref[...] = (lane == first).astype(jnp.int8)


def get_prediction(fusion_fs, lan_fs, block_b=None):
    B, K, D = fusion_fs.shape
    B2, Y, D2 = lan_fs.shape
    assert B == B2 and D == D2

    if block_b is None:
        block_b = next(bt for bt in (8, 4, 2, 1) if B % bt == 0)
    assert B % block_b == 0

    # NOTE: for production sizes K should be padded to a multiple of 128 (with -inf
    # masking of the pad columns) to get fully lane-dense stores.
    pred_i8 = pl.pallas_call(
        _prediction_kernel,
        out_shape=jax.ShapeDtypeStruct((B, Y, K), jnp.int8),
        grid_spec=pltpu.PrefetchScalarGridSpec(
            num_scalar_prefetch=0,
            grid=(B // block_b,),
            in_specs=[
                pl.BlockSpec((block_b, K, D), lambda b: (b, 0, 0)),
                pl.BlockSpec((block_b, Y, D), lambda b: (b, 0, 0)),
            ],
            out_specs=pl.BlockSpec((block_b, Y, K), lambda b: (b, 0, 0)),
        ),
        compiler_params=pltpu.CompilerParams(
            dimension_semantics=("parallel",),
        ),
    )(fusion_fs, lan_fs)
    return pred_i8.astype(jnp.bool_)


# ---------------------------------------------------------------------------
# Module-equivalent wrapper
# ---------------------------------------------------------------------------
def weak_res_head(fusion_fs, lan_fs, training=True):
    if training:
        return get_contrast(fusion_fs, lan_fs)
    return get_prediction(fusion_fs, lan_fs)


# ---------------------------------------------------------------------------
# Pure-JAX references (mirror the PyTorch code).  `mm_dtype` controls the
# matmul input dtype so we can check both against full-f32 semantics (loose
# tolerance: the kernel's MXU path rounds inputs to bf16) and against a
# precision-matched bf16 reference (tight tolerance).
# ---------------------------------------------------------------------------
def _ref_contrast(vis_emb, lan_emb, mm_dtype=jnp.float32):
    prec = (jax.lax.Precision.HIGHEST if mm_dtype == jnp.float32
            else jax.lax.Precision.DEFAULT)
    sim = jnp.einsum('avd,bqd->baqv', vis_emb.astype(mm_dtype),
                     lan_emb.astype(mm_dtype), precision=prec,
                     preferred_element_type=jnp.float32)             # (b, a, q, v)
    top2 = jax.lax.top_k(sim, 2)[0]                                  # (b, a, q, 2)
    max_sims = top2[:, :, 0, :]                                      # squeeze q
    max0, max1 = max_sims[..., 0], max_sims[..., 1]
    Bn = sim.shape[0]
    off = ~np.eye(Bn, dtype=bool)
    max1_off = max1[off].reshape(Bn, Bn - 1)
    logits = jnp.concatenate([max0, max1_off], axis=1)
    lse = jax.nn.logsumexp(logits, axis=1)
    return jnp.mean(lse - logits[jnp.arange(Bn), jnp.arange(Bn)])


def _ref_prediction(vis_emb, lan_emb, mm_dtype=jnp.float32):
    prec = (jax.lax.Precision.HIGHEST if mm_dtype == jnp.float32
            else jax.lax.Precision.DEFAULT)
    sim = jnp.einsum('bkd,byd->byk', vis_emb.astype(mm_dtype),
                     lan_emb.astype(mm_dtype), precision=prec,
                     preferred_element_type=jnp.float32)
    arg = jnp.argmax(sim, axis=2)
    return jax.nn.one_hot(arg, sim.shape[2]) > 0


if __name__ == "__main__":
    key = jax.random.PRNGKey(0)
    k1, k2 = jax.random.split(key)

    B, V, Q, D = 8, 16, 1, 32  # batch, anchors per image, queries (=1), embed dim
    fusion_fs = jax.random.normal(k1, (B, V, D), dtype=jnp.float32)
    lan_fs = jax.random.normal(k2, (B, Q, D), dtype=jnp.float32)

    # Training path: contrastive loss.  Eval path: one-hot predictions.
    loss = weak_res_head(fusion_fs, lan_fs, training=True)
    preds = weak_res_head(fusion_fs, lan_fs, training=False)
    jax.block_until_ready((loss, preds))

    # Tight check against a precision-matched (bf16 matmul, f32 accumulate) reference.
    ref_loss_bf16 = _ref_contrast(fusion_fs, lan_fs, jnp.bfloat16)
    ref_pred_bf16 = _ref_prediction(fusion_fs, lan_fs, jnp.bfloat16)
    np.testing.assert_allclose(np.asarray(loss), np.asarray(ref_loss_bf16),
                               rtol=1e-3, atol=1e-3)
    assert np.array_equal(np.asarray(preds), np.asarray(ref_pred_bf16))

    # Loose check against the full-f32 reference (bf16 MXU rounding tolerance).
    ref_loss_f32 = _ref_contrast(fusion_fs, lan_fs, jnp.float32)
    np.testing.assert_allclose(np.asarray(loss), np.asarray(ref_loss_f32),
                               rtol=0.05, atol=0.1)

    print("KERNEL_OK")
</pallas_src>

<mosaic_0001>
module attributes {stable_mosaic.version = 11 : i64} {
  func.func @_contrast_kernel(%arg0: i32, %arg1: memref<8x32xf32, #tpu.memory_space<vmem>>, %arg2: memref<8x16x32xf32, #tpu.memory_space<vmem>>, %arg3: memref<1x1xf32, #tpu.memory_space<vmem>>, %arg4: memref<8x1xf32, #tpu.memory_space<vmem>>, %arg5: memref<8x1xf32, #tpu.memory_space<vmem>>, %arg6: memref<8x1xf32, #tpu.memory_space<vmem>>) attributes {dimension_semantics = [#tpu.dimension_semantics<arbitrary>], iteration_bounds = array<i64: 1>, scalar_prefetch = 0 : i64, scratch_operands = 3 : i64, tpu.core_type = #tpu.core_type<tc>, window_params = [{pipeline_mode = #tpu.pipeline_mode<synchronous>, transform_indices = @transform_0, window_bounds = array<i64: 8, 32>}, {transform_indices = @transform_1, window_bounds = array<i64: 8, 16, 32>}, {pipeline_mode = #tpu.pipeline_mode<synchronous>, transform_indices = @transform_2, window_bounds = array<i64: 1, 1>}]} {
    %c0_i32 = arith.constant 0 : i32
    %0 = arith.cmpi eq, %arg0, %c0_i32 : i32
    %1 = arith.extui %0 : i1 to i32
    %c0_i32_0 = arith.constant 0 : i32
    %2 = arith.cmpi ne, %1, %c0_i32_0 : i32
    scf.if %2 {
      %cst_187 = arith.constant 0xFF800000 : f32
      %369 = vector.broadcast %cst_187 : f32 to vector<8x1xf32>
      %c0_188 = arith.constant 0 : index
      %c0_189 = arith.constant 0 : index
      %370 = vector.load %arg4[%c0_188, %c0_189] : memref<8x1xf32, #tpu.memory_space<vmem>>, vector<8x1xf32>
      tpu.vector_store %arg4[%c0_188, %c0_189], %369 {strides = array<i32>} : memref<8x1xf32, #tpu.memory_space<vmem>>, vector<8x1xf32>,
      %cst_190 = arith.constant 0.000000e+00 : f32
      %371 = vector.broadcast %cst_190 : f32 to vector<8x1xf32>
      %c0_191 = arith.constant 0 : index
      %c0_192 = arith.constant 0 : index
      %372 = vector.load %arg5[%c0_191, %c0_192] : memref<8x1xf32, #tpu.memory_space<vmem>>, vector<8x1xf32>
      tpu.vector_store %arg5[%c0_191, %c0_192], %371 {strides = array<i32>} : memref<8x1xf32, #tpu.memory_space<vmem>>, vector<8x1xf32>,
      %cst_193 = arith.constant 0.000000e+00 : f32
      %373 = vector.broadcast %cst_193 : f32 to vector<8x1xf32>
      %c0_194 = arith.constant 0 : index
      %c0_195 = arith.constant 0 : index
      %374 = vector.load %arg6[%c0_194, %c0_195] : memref<8x1xf32, #tpu.memory_space<vmem>>, vector<8x1xf32>
      tpu.vector_store %arg6[%c0_194, %c0_195], %373 {strides = array<i32>} : memref<8x1xf32, #tpu.memory_space<vmem>>, vector<8x1xf32>,
    } else {
    }
    %c0 = arith.constant 0 : index
    %c0_1 = arith.constant 0 : index
    %3 = vector.load %arg1[%c0, %c0_1] : memref<8x32xf32, #tpu.memory_space<vmem>>, vector<8x32xf32>
    %4 = arith.truncf %3 : vector<8x32xf32> to vector<8x32xbf16>
    %5 = tpu.iota {dimensions = array<i32: 0>} : vector<8x1xi32>
    %c8_i32 = arith.constant 8 : i32
    %6 = arith.muli %arg0, %c8_i32 : i32
    %c0_i32_2 = arith.constant 0 : i32
    %7 = arith.addi %6, %c0_i32_2 : i32
    %c0_3 = arith.constant 0 : index
    %c0_4 = arith.constant 0 : index
    %c0_5 = arith.constant 0 : index
    %8 = vector.load %arg2[%c0_3, %c0_4, %c0_5] : memref<8x16x32xf32, #tpu.memory_space<vmem>>, vector<1x16x32xf32>
    %9 = vector.shape_cast %8 : vector<1x16x32xf32> to vector<16x32xf32>
    %10 = arith.truncf %9 : vector<16x32xf32> to vector<16x32xbf16>
    %cst = arith.constant dense<0.000000e+00> : vector<8x16xf32>
    %11 = tpu.matmul %4, %10, %cst {dimension_numbers = #tpu.dot_dimension_numbers<[1], [1], [0], [0], [0, 0, 1, 0], [], []>} : vector<8x32xbf16>, vector<16x32xbf16>, vector<8x16xf32> -> vector<8x16xf32>
    %12 = tpu.iota {dimensions = array<i32: 1>} : vector<8x16xi32>
    %cst_6 = arith.constant dense<0xFF800000> : vector<8xf32>
    %13 = vector.multi_reduction <maximumf>, %11, %cst_6 [1] : vector<8x16xf32> to vector<8xf32>
    %14 = vector.shape_cast %13 : vector<8xf32> to vector<8x1xf32>
    %15 = vector.broadcast %14 : vector<8x1xf32> to vector<8x16xf32>
    %16 = arith.cmpf oeq, %11, %15 : vector<8x16xf32>
    %c16_i32 = arith.constant 16 : i32
    %17 = vector.broadcast %c16_i32 : i32 to vector<8x16xi32>
    %18 = arith.select %16, %12, %17 : vector<8x16xi1>, vector<8x16xi32>
    %cst_7 = arith.constant dense<2147483647> : vector<8xi32>
    %19 = vector.multi_reduction <minsi>, %18, %cst_7 [1] : vector<8x16xi32> to vector<8xi32>
    %20 = vector.shape_cast %19 : vector<8xi32> to vector<8x1xi32>
    %21 = vector.broadcast %20 : vector<8x1xi32> to vector<8x16xi32>
    %22 = arith.cmpi eq, %12, %21 : vector<8x16xi32>
    %cst_8 = arith.constant 0xFF800000 : f32
    %23 = vector.broadcast %cst_8 : f32 to vector<8x16xf32>
    %24 = arith.select %22, %23, %11 : vector<8x16xi1>, vector<8x16xf32>
    %cst_9 = arith.constant dense<0xFF800000> : vector<8xf32>
    %25 = vector.multi_reduction <maximumf>, %24, %cst_9 [1] : vector<8x16xf32> to vector<8xf32>
    %26 = vector.shape_cast %25 : vector<8xf32> to vector<8x1xf32>
    %27 = vector.broadcast %7 : i32 to vector<8x1xi32>
    %28 = arith.cmpi eq, %5, %27 : vector<8x1xi32>
    %cst_10 = arith.constant 0xFF800000 : f32
    %29 = vector.broadcast %cst_10 : f32 to vector<8x1xf32>
    %30 = arith.select %28, %29, %26 : vector<8x1xi1>, vector<8x1xf32>
    %c0_11 = arith.constant 0 : index
    %c0_12 = arith.constant 0 : index
    %31 = vector.load %arg4[%c0_11, %c0_12] : memref<8x1xf32, #tpu.memory_space<vmem>>, vector<8x1xf32>
    %32 = arith.maximumf %14, %30 : vector<8x1xf32>
    %33 = arith.maximumf %31, %32 : vector<8x1xf32>
    %c0_13 = arith.constant 0 : index
    %c0_14 = arith.constant 0 : index
    %34 = vector.load %arg5[%c0_13, %c0_14] : memref<8x1xf32, #tpu.memory_space<vmem>>, vector<8x1xf32>
    %35 = arith.subf %31, %33 : vector<8x1xf32>
    %36 = math.exp %35 : vector<8x1xf32>
    %37 = arith.mulf %34, %36 : vector<8x1xf32>
    %38 = arith.subf %14, %33 : vector<8x1xf32>
    %39 = math.exp %38 : vector<8x1xf32>
    %40 = arith.addf %37, %39 : vector<8x1xf32>
    %41 = arith.subf %30, %33 : vector<8x1xf32>
    %42 = math.exp %41 : vector<8x1xf32>
    %43 = arith.addf %40, %42 : vector<8x1xf32>
    %c0_15 = arith.constant 0 : index
    %c0_16 = arith.constant 0 : index
    %44 = vector.load %arg5[%c0_15, %c0_16] : memref<8x1xf32, #tpu.memory_space<vmem>>, vector<8x1xf32>
    tpu.vector_store %arg5[%c0_15, %c0_16], %43 {strides = array<i32>} : memref<8x1xf32, #tpu.memory_space<vmem>>, vector<8x1xf32>,
    %c0_17 = arith.constant 0 : index
    %c0_18 = arith.constant 0 : index
    %45 = vector.load %arg6[%c0_17, %c0_18] : memref<8x1xf32, #tpu.memory_space<vmem>>, vector<8x1xf32>
    %cst_19 = arith.constant 0.000000e+00 : f32
    %46 = vector.broadcast %cst_19 : f32 to vector<8x1xf32>
    %47 = arith.select %28, %14, %46 : vector<8x1xi1>, vector<8x1xf32>
    %48 = arith.addf %45, %47 : vector<8x1xf32>
    %c0_20 = arith.constant 0 : index
    %c0_21 = arith.constant 0 : index
    %49 = vector.load %arg6[%c0_20, %c0_21] : memref<8x1xf32, #tpu.memory_space<vmem>>, vector<8x1xf32>
    tpu.vector_store %arg6[%c0_20, %c0_21], %48 {strides = array<i32>} : memref<8x1xf32, #tpu.memory_space<vmem>>, vector<8x1xf32>,
    %c0_22 = arith.constant 0 : index
    %c0_23 = arith.constant 0 : index
    %50 = vector.load %arg4[%c0_22, %c0_23] : memref<8x1xf32, #tpu.memory_space<vmem>>, vector<8x1xf32>
    tpu.vector_store %arg4[%c0_22, %c0_23], %33 {strides = array<i32>} : memref<8x1xf32, #tpu.memory_space<vmem>>, vector<8x1xf32>,
    %c8_i32_24 = arith.constant 8 : i32
    %51 = arith.muli %arg0, %c8_i32_24 : i32
    %c1_i32 = arith.constant 1 : i32
    %52 = arith.addi %51, %c1_i32 : i32
    %c1 = arith.constant 1 : index
    %c0_25 = arith.constant 0 : index
    %c0_26 = arith.constant 0 : index
    %53 = vector.load %arg2[%c1, %c0_25, %c0_26] : memref<8x16x32xf32, #tpu.memory_space<vmem>>, vector<1x16x32xf32>
    %54 = vector.shape_cast %53 : vector<1x16x32xf32> to vector<16x32xf32>
    %55 = arith.truncf %54 : vector<16x32xf32> to vector<16x32xbf16>
    %cst_27 = arith.constant dense<0.000000e+00> : vector<8x16xf32>
    %56 = tpu.matmul %4, %55, %cst_27 {dimension_numbers = #tpu.dot_dimension_numbers<[1], [1], [0], [0], [0, 0, 1, 0], [], []>} : vector<8x32xbf16>, vector<16x32xbf16>, vector<8x16xf32> -> vector<8x16xf32>
    %57 = tpu.iota {dimensions = array<i32: 1>} : vector<8x16xi32>
    %cst_28 = arith.constant dense<0xFF800000> : vector<8xf32>
    %58 = vector.multi_reduction <maximumf>, %56, %cst_28 [1] : vector<8x16xf32> to vector<8xf32>
    %59 = vector.shape_cast %58 : vector<8xf32> to vector<8x1xf32>
    %60 = vector.broadcast %59 : vector<8x1xf32> to vector<8x16xf32>
    %61 = arith.cmpf oeq, %56, %60 : vector<8x16xf32>
    %c16_i32_29 = arith.constant 16 : i32
    %62 = vector.broadcast %c16_i32_29 : i32 to vector<8x16xi32>
    %63 = arith.select %61, %57, %62 : vector<8x16xi1>, vector<8x16xi32>
    %cst_30 = arith.constant dense<2147483647> : vector<8xi32>
    %64 = vector.multi_reduction <minsi>, %63, %cst_30 [1] : vector<8x16xi32> to vector<8xi32>
    %65 = vector.shape_cast %64 : vector<8xi32> to vector<8x1xi32>
    %66 = vector.broadcast %65 : vector<8x1xi32> to vector<8x16xi32>
    %67 = arith.cmpi eq, %57, %66 : vector<8x16xi32>
    %cst_31 = arith.constant 0xFF800000 : f32
    %68 = vector.broadcast %cst_31 : f32 to vector<8x16xf32>
    %69 = arith.select %67, %68, %56 : vector<8x16xi1>, vector<8x16xf32>
    %cst_32 = arith.constant dense<0xFF800000> : vector<8xf32>
    %70 = vector.multi_reduction <maximumf>, %69, %cst_32 [1] : vector<8x16xf32> to vector<8xf32>
    %71 = vector.shape_cast %70 : vector<8xf32> to vector<8x1xf32>
    %72 = vector.broadcast %52 : i32 to vector<8x1xi32>
    %73 = arith.cmpi eq, %5, %72 : vector<8x1xi32>
    %cst_33 = arith.constant 0xFF800000 : f32
    %74 = vector.broadcast %cst_33 : f32 to vector<8x1xf32>
    %75 = arith.select %73, %74, %71 : vector<8x1xi1>, vector<8x1xf32>
    %c0_34 = arith.constant 0 : index
    %c0_35 = arith.constant 0 : index
    %76 = vector.load %arg4[%c0_34, %c0_35] : memref<8x1xf32, #tpu.memory_space<vmem>>, vector<8x1xf32>
    %77 = arith.maximumf %59, %75 : vector<8x1xf32>
    %78 = arith.maximumf %76, %77 : vector<8x1xf32>
    %c0_36 = arith.constant 0 : index
    %c0_37 = arith.constant 0 : index
    %79 = vector.load %arg5[%c0_36, %c0_37] : memref<8x1xf32, #tpu.memory_space<vmem>>, vector<8x1xf32>
    %80 = arith.subf %76, %78 : vector<8x1xf32>
    %81 = math.exp %80 : vector<8x1xf32>
    %82 = arith.mulf %79, %81 : vector<8x1xf32>
    %83 = arith.subf %59, %78 : vector<8x1xf32>
    %84 = math.exp %83 : vector<8x1xf32>
    %85 = arith.addf %82, %84 : vector<8x1xf32>
    %86 = arith.subf %75, %78 : vector<8x1xf32>
    %87 = math.exp %86 : vector<8x1xf32>
    %88 = arith.addf %85, %87 : vector<8x1xf32>
    %c0_38 = arith.constant 0 : index
    %c0_39 = arith.constant 0 : index
    %89 = vector.load %arg5[%c0_38, %c0_39] : memref<8x1xf32, #tpu.memory_space<vmem>>, vector<8x1xf32>
    tpu.vector_store %arg5[%c0_38, %c0_39], %88 {strides = array<i32>} : memref<8x1xf32, #tpu.memory_space<vmem>>, vector<8x1xf32>,
    %c0_40 = arith.constant 0 : index
    %c0_41 = arith.constant 0 : index
    %90 = vector.load %arg6[%c0_40, %c0_41] : memref<8x1xf32, #tpu.memory_space<vmem>>, vector<8x1xf32>
    %cst_42 = arith.constant 0.000000e+00 : f32
    %91 = vector.broadcast %cst_42 : f32 to vector<8x1xf32>
    %92 = arith.select %73, %59, %91 : vector<8x1xi1>, vector<8x1xf32>
    %93 = arith.addf %90, %92 : vector<8x1xf32>
    %c0_43 = arith.constant 0 : index
    %c0_44 = arith.constant 0 : index
    %94 = vector.load %arg6[%c0_43, %c0_44] : memref<8x1xf32, #tpu.memory_space<vmem>>, vector<8x1xf32>
    tpu.vector_store %arg6[%c0_43, %c0_44], %93 {strides = array<i32>} : memref<8x1xf32, #tpu.memory_space<vmem>>, vector<8x1xf32>,
    %c0_45 = arith.constant 0 : index
    %c0_46 = arith.constant 0 : index
    %95 = vector.load %arg4[%c0_45, %c0_46] : memref<8x1xf32, #tpu.memory_space<vmem>>, vector<8x1xf32>
    tpu.vector_store %arg4[%c0_45, %c0_46], %78 {strides = array<i32>} : memref<8x1xf32, #tpu.memory_space<vmem>>, vector<8x1xf32>,
    %c8_i32_47 = arith.constant 8 : i32
    %96 = arith.muli %arg0, %c8_i32_47 : i32
    %c2_i32 = arith.constant 2 : i32
    %97 = arith.addi %96, %c2_i32 : i32
    %c2 = arith.constant 2 : index
    %c0_48 = arith.constant 0 : index
    %c0_49 = arith.constant 0 : index
    %98 = vector.load %arg2[%c2, %c0_48, %c0_49] : memref<8x16x32xf32, #tpu.memory_space<vmem>>, vector<1x16x32xf32>
    %99 = vector.shape_cast %98 : vector<1x16x32xf32> to vector<16x32xf32>
    %100 = arith.truncf %99 : vector<16x32xf32> to vector<16x32xbf16>
    %cst_50 = arith.constant dense<0.000000e+00> : vector<8x16xf32>
    %101 = tpu.matmul %4, %100, %cst_50 {dimension_numbers = #tpu.dot_dimension_numbers<[1], [1], [0], [0], [0, 0, 1, 0], [], []>} : vector<8x32xbf16>, vector<16x32xbf16>, vector<8x16xf32> -> vector<8x16xf32>
    %102 = tpu.iota {dimensions = array<i32: 1>} : vector<8x16xi32>
    %cst_51 = arith.constant dense<0xFF800000> : vector<8xf32>
    %103 = vector.multi_reduction <maximumf>, %101, %cst_51 [1] : vector<8x16xf32> to vector<8xf32>
    %104 = vector.shape_cast %103 : vector<8xf32> to vector<8x1xf32>
    %105 = vector.broadcast %104 : vector<8x1xf32> to vector<8x16xf32>
    %106 = arith.cmpf oeq, %101, %105 : vector<8x16xf32>
    %c16_i32_52 = arith.constant 16 : i32
    %107 = vector.broadcast %c16_i32_52 : i32 to vector<8x16xi32>
    %108 = arith.select %106, %102, %107 : vector<8x16xi1>, vector<8x16xi32>
    %cst_53 = arith.constant dense<2147483647> : vector<8xi32>
    %109 = vector.multi_reduction <minsi>, %108, %cst_53 [1] : vector<8x16xi32> to vector<8xi32>
    %110 = vector.shape_cast %109 : vector<8xi32> to vector<8x1xi32>
    %111 = vector.broadcast %110 : vector<8x1xi32> to vector<8x16xi32>
    %112 = arith.cmpi eq, %102, %111 : vector<8x16xi32>
    %cst_54 = arith.constant 0xFF800000 : f32
    %113 = vector.broadcast %cst_54 : f32 to vector<8x16xf32>
    %114 = arith.select %112, %113, %101 : vector<8x16xi1>, vector<8x16xf32>
    %cst_55 = arith.constant dense<0xFF800000> : vector<8xf32>
    %115 = vector.multi_reduction <maximumf>, %114, %cst_55 [1] : vector<8x16xf32> to vector<8xf32>
    %116 = vector.shape_cast %115 : vector<8xf32> to vector<8x1xf32>
    %117 = vector.broadcast %97 : i32 to vector<8x1xi32>
    %118 = arith.cmpi eq, %5, %117 : vector<8x1xi32>
    %cst_56 = arith.constant 0xFF800000 : f32
    %119 = vector.broadcast %cst_56 : f32 to vector<8x1xf32>
    %120 = arith.select %118, %119, %116 : vector<8x1xi1>, vector<8x1xf32>
    %c0_57 = arith.constant 0 : index
    %c0_58 = arith.constant 0 : index
    %121 = vector.load %arg4[%c0_57, %c0_58] : memref<8x1xf32, #tpu.memory_space<vmem>>, vector<8x1xf32>
    %122 = arith.maximumf %104, %120 : vector<8x1xf32>
    %123 = arith.maximumf %121, %122 : vector<8x1xf32>
    %c0_59 = arith.constant 0 : index
    %c0_60 = arith.constant 0 : index
    %124 = vector.load %arg5[%c0_59, %c0_60] : memref<8x1xf32, #tpu.memory_space<vmem>>, vector<8x1xf32>
    %125 = arith.subf %121, %123 : vector<8x1xf32>
    %126 = math.exp %125 : vector<8x1xf32>
    %127 = arith.mulf %124, %126 : vector<8x1xf32>
    %128 = arith.subf %104, %123 : vector<8x1xf32>
    %129 = math.exp %128 : vector<8x1xf32>
    %130 = arith.addf %127, %129 : vector<8x1xf32>
    %131 = arith.subf %120, %123 : vector<8x1xf32>
    %132 = math.exp %131 : vector<8x1xf32>
    %133 = arith.addf %130, %132 : vector<8x1xf32>
    %c0_61 = arith.constant 0 : index
    %c0_62 = arith.constant 0 : index
    %134 = vector.load %arg5[%c0_61, %c0_62] : memref<8x1xf32, #tpu.memory_space<vmem>>, vector<8x1xf32>
    tpu.vector_store %arg5[%c0_61, %c0_62], %133 {strides = array<i32>} : memref<8x1xf32, #tpu.memory_space<vmem>>, vector<8x1xf32>,
    %c0_63 = arith.constant 0 : index
    %c0_64 = arith.constant 0 : index
    %135 = vector.load %arg6[%c0_63, %c0_64] : memref<8x1xf32, #tpu.memory_space<vmem>>, vector<8x1xf32>
    %cst_65 = arith.constant 0.000000e+00 : f32
    %136 = vector.broadcast %cst_65 : f32 to vector<8x1xf32>
    %137 = arith.select %118, %104, %136 : vector<8x1xi1>, vector<8x1xf32>
    %138 = arith.addf %135, %137 : vector<8x1xf32>
    %c0_66 = arith.constant 0 : index
    %c0_67 = arith.constant 0 : index
    %139 = vector.load %arg6[%c0_66, %c0_67] : memref<8x1xf32, #tpu.memory_space<vmem>>, vector<8x1xf32>
    tpu.vector_store %arg6[%c0_66, %c0_67], %138 {strides = array<i32>} : memref<8x1xf32, #tpu.memory_space<vmem>>, vector<8x1xf32>,
    %c0_68 = arith.constant 0 : index
    %c0_69 = arith.constant 0 : index
    %140 = vector.load %arg4[%c0_68, %c0_69] : memref<8x1xf32, #tpu.memory_space<vmem>>, vector<8x1xf32>
    tpu.vector_store %arg4[%c0_68, %c0_69], %123 {strides = array<i32>} : memref<8x1xf32, #tpu.memory_space<vmem>>, vector<8x1xf32>,
    %c8_i32_70 = arith.constant 8 : i32
    %141 = arith.muli %arg0, %c8_i32_70 : i32
    %c3_i32 = arith.constant 3 : i32
    %142 = arith.addi %141, %c3_i32 : i32
    %c3 = arith.constant 3 : index
    %c0_71 = arith.constant 0 : index
    %c0_72 = arith.constant 0 : index
    %143 = vector.load %arg2[%c3, %c0_71, %c0_72] : memref<8x16x32xf32, #tpu.memory_space<vmem>>, vector<1x16x32xf32>
    %144 = vector.shape_cast %143 : vector<1x16x32xf32> to vector<16x32xf32>
    %145 = arith.truncf %144 : vector<16x32xf32> to vector<16x32xbf16>
    %cst_73 = arith.constant dense<0.000000e+00> : vector<8x16xf32>
    %146 = tpu.matmul %4, %145, %cst_73 {dimension_numbers = #tpu.dot_dimension_numbers<[1], [1], [0], [0], [0, 0, 1, 0], [], []>} : vector<8x32xbf16>, vector<16x32xbf16>, vector<8x16xf32> -> vector<8x16xf32>
    %147 = tpu.iota {dimensions = array<i32: 1>} : vector<8x16xi32>
    %cst_74 = arith.constant dense<0xFF800000> : vector<8xf32>
    %148 = vector.multi_reduction <maximumf>, %146, %cst_74 [1] : vector<8x16xf32> to vector<8xf32>
    %149 = vector.shape_cast %148 : vector<8xf32> to vector<8x1xf32>
    %150 = vector.broadcast %149 : vector<8x1xf32> to vector<8x16xf32>
    %151 = arith.cmpf oeq, %146, %150 : vector<8x16xf32>
    %c16_i32_75 = arith.constant 16 : i32
    %152 = vector.broadcast %c16_i32_75 : i32 to vector<8x16xi32>
    %153 = arith.select %151, %147, %152 : vector<8x16xi1>, vector<8x16xi32>
    %cst_76 = arith.constant dense<2147483647> : vector<8xi32>
    %154 = vector.multi_reduction <minsi>, %153, %cst_76 [1] : vector<8x16xi32> to vector<8xi32>
    %155 = vector.shape_cast %154 : vector<8xi32> to vector<8x1xi32>
    %156 = vector.broadcast %155 : vector<8x1xi32> to vector<8x16xi32>
    %157 = arith.cmpi eq, %147, %156 : vector<8x16xi32>
    %cst_77 = arith.constant 0xFF800000 : f32
    %158 = vector.broadcast %cst_77 : f32 to vector<8x16xf32>
    %159 = arith.select %157, %158, %146 : vector<8x16xi1>, vector<8x16xf32>
    %cst_78 = arith.constant dense<0xFF800000> : vector<8xf32>
    %160 = vector.multi_reduction <maximumf>, %159, %cst_78 [1] : vector<8x16xf32> to vector<8xf32>
    %161 = vector.shape_cast %160 : vector<8xf32> to vector<8x1xf32>
    %162 = vector.broadcast %142 : i32 to vector<8x1xi32>
    %163 = arith.cmpi eq, %5, %162 : vector<8x1xi32>
    %cst_79 = arith.constant 0xFF800000 : f32
    %164 = vector.broadcast %cst_79 : f32 to vector<8x1xf32>
    %165 = arith.select %163, %164, %161 : vector<8x1xi1>, vector<8x1xf32>
    %c0_80 = arith.constant 0 : index
    %c0_81 = arith.constant 0 : index
    %166 = vector.load %arg4[%c0_80, %c0_81] : memref<8x1xf32, #tpu.memory_space<vmem>>, vector<8x1xf32>
    %167 = arith.maximumf %149, %165 : vector<8x1xf32>
    %168 = arith.maximumf %166, %167 : vector<8x1xf32>
    %c0_82 = arith.constant 0 : index
    %c0_83 = arith.constant 0 : index
    %169 = vector.load %arg5[%c0_82, %c0_83] : memref<8x1xf32, #tpu.memory_space<vmem>>, vector<8x1xf32>
    %170 = arith.subf %166, %168 : vector<8x1xf32>
    %171 = math.exp %170 : vector<8x1xf32>
    %172 = arith.mulf %169, %171 : vector<8x1xf32>
    %173 = arith.subf %149, %168 : vector<8x1xf32>
    %174 = math.exp %173 : vector<8x1xf32>
    %175 = arith.addf %172, %174 : vector<8x1xf32>
    %176 = arith.subf %165, %168 : vector<8x1xf32>
    %177 = math.exp %176 : vector<8x1xf32>
    %178 = arith.addf %175, %177 : vector<8x1xf32>
    %c0_84 = arith.constant 0 : index
    %c0_85 = arith.constant 0 : index
    %179 = vector.load %arg5[%c0_84, %c0_85] : memref<8x1xf32, #tpu.memory_space<vmem>>, vector<8x1xf32>
    tpu.vector_store %arg5[%c0_84, %c0_85], %178 {strides = array<i32>} : memref<8x1xf32, #tpu.memory_space<vmem>>, vector<8x1xf32>,
    %c0_86 = arith.constant 0 : index
    %c0_87 = arith.constant 0 : index
    %180 = vector.load %arg6[%c0_86, %c0_87] : memref<8x1xf32, #tpu.memory_space<vmem>>, vector<8x1xf32>
    %cst_88 = arith.constant 0.000000e+00 : f32
    %181 = vector.broadcast %cst_88 : f32 to vector<8x1xf32>
    %182 = arith.select %163, %149, %181 : vector<8x1xi1>, vector<8x1xf32>
    %183 = arith.addf %180, %182 : vector<8x1xf32>
    %c0_89 = arith.constant 0 : index
    %c0_90 = arith.constant 0 : index
    %184 = vector.load %arg6[%c0_89, %c0_90] : memref<8x1xf32, #tpu.memory_space<vmem>>, vector<8x1xf32>
    tpu.vector_store %arg6[%c0_89, %c0_90], %183 {strides = array<i32>} : memref<8x1xf32, #tpu.memory_space<vmem>>, vector<8x1xf32>,
    %c0_91 = arith.constant 0 : index
    %c0_92 = arith.constant 0 : index
    %185 = vector.load %arg4[%c0_91, %c0_92] : memref<8x1xf32, #tpu.memory_space<vmem>>, vector<8x1xf32>
    tpu.vector_store %arg4[%c0_91, %c0_92], %168 {strides = array<i32>} : memref<8x1xf32, #tpu.memory_space<vmem>>, vector<8x1xf32>,
    %c8_i32_93 = arith.constant 8 : i32
    %186 = arith.muli %arg0, %c8_i32_93 : i32
    %c4_i32 = arith.constant 4 : i32
    %187 = arith.addi %186, %c4_i32 : i32
    %c4 = arith.constant 4 : index
    %c0_94 = arith.constant 0 : index
    %c0_95 = arith.constant 0 : index
    %188 = vector.load %arg2[%c4, %c0_94, %c0_95] : memref<8x16x32xf32, #tpu.memory_space<vmem>>, vector<1x16x32xf32>
    %189 = vector.shape_cast %188 : vector<1x16x32xf32> to vector<16x32xf32>
    %190 = arith.truncf %189 : vector<16x32xf32> to vector<16x32xbf16>
    %cst_96 = arith.constant dense<0.000000e+00> : vector<8x16xf32>
    %191 = tpu.matmul %4, %190, %cst_96 {dimension_numbers = #tpu.dot_dimension_numbers<[1], [1], [0], [0], [0, 0, 1, 0], [], []>} : vector<8x32xbf16>, vector<16x32xbf16>, vector<8x16xf32> -> vector<8x16xf32>
    %192 = tpu.iota {dimensions = array<i32: 1>} : vector<8x16xi32>
    %cst_97 = arith.constant dense<0xFF800000> : vector<8xf32>
    %193 = vector.multi_reduction <maximumf>, %191, %cst_97 [1] : vector<8x16xf32> to vector<8xf32>
    %194 = vector.shape_cast %193 : vector<8xf32> to vector<8x1xf32>
    %195 = vector.broadcast %194 : vector<8x1xf32> to vector<8x16xf32>
    %196 = arith.cmpf oeq, %191, %195 : vector<8x16xf32>
    %c16_i32_98 = arith.constant 16 : i32
    %197 = vector.broadcast %c16_i32_98 : i32 to vector<8x16xi32>
    %198 = arith.select %196, %192, %197 : vector<8x16xi1>, vector<8x16xi32>
    %cst_99 = arith.constant dense<2147483647> : vector<8xi32>
    %199 = vector.multi_reduction <minsi>, %198, %cst_99 [1] : vector<8x16xi32> to vector<8xi32>
    %200 = vector.shape_cast %199 : vector<8xi32> to vector<8x1xi32>
    %201 = vector.broadcast %200 : vector<8x1xi32> to vector<8x16xi32>
    %202 = arith.cmpi eq, %192, %201 : vector<8x16xi32>
    %cst_100 = arith.constant 0xFF800000 : f32
    %203 = vector.broadcast %cst_100 : f32 to vector<8x16xf32>
    %204 = arith.select %202, %203, %191 : vector<8x16xi1>, vector<8x16xf32>
    %cst_101 = arith.constant dense<0xFF800000> : vector<8xf32>
    %205 = vector.multi_reduction <maximumf>, %204, %cst_101 [1] : vector<8x16xf32> to vector<8xf32>
    %206 = vector.shape_cast %205 : vector<8xf32> to vector<8x1xf32>
    %207 = vector.broadcast %187 : i32 to vector<8x1xi32>
    %208 = arith.cmpi eq, %5, %207 : vector<8x1xi32>
    %cst_102 = arith.constant 0xFF800000 : f32
    %209 = vector.broadcast %cst_102 : f32 to vector<8x1xf32>
    %210 = arith.select %208, %209, %206 : vector<8x1xi1>, vector<8x1xf32>
    %c0_103 = arith.constant 0 : index
    %c0_104 = arith.constant 0 : index
    %211 = vector.load %arg4[%c0_103, %c0_104] : memref<8x1xf32, #tpu.memory_space<vmem>>, vector<8x1xf32>
    %212 = arith.maximumf %194, %210 : vector<8x1xf32>
    %213 = arith.maximumf %211, %212 : vector<8x1xf32>
    %c0_105 = arith.constant 0 : index
    %c0_106 = arith.constant 0 : index
    %214 = vector.load %arg5[%c0_105, %c0_106] : memref<8x1xf32, #tpu.memory_space<vmem>>, vector<8x1xf32>
    %215 = arith.subf %211, %213 : vector<8x1xf32>
    %216 = math.exp %215 : vector<8x1xf32>
    %217 = arith.mulf %214, %216 : vector<8x1xf32>
    %218 = arith.subf %194, %213 : vector<8x1xf32>
    %219 = math.exp %218 : vector<8x1xf32>
    %220 = arith.addf %217, %219 : vector<8x1xf32>
    %221 = arith.subf %210, %213 : vector<8x1xf32>
    %222 = math.exp %221 : vector<8x1xf32>
    %223 = arith.addf %220, %222 : vector<8x1xf32>
    %c0_107 = arith.constant 0 : index
    %c0_108 = arith.constant 0 : index
    %224 = vector.load %arg5[%c0_107, %c0_108] : memref<8x1xf32, #tpu.memory_space<vmem>>, vector<8x1xf32>
    tpu.vector_store %arg5[%c0_107, %c0_108], %223 {strides = array<i32>} : memref<8x1xf32, #tpu.memory_space<vmem>>, vector<8x1xf32>,
    %c0_109 = arith.constant 0 : index
    %c0_110 = arith.constant 0 : index
    %225 = vector.load %arg6[%c0_109, %c0_110] : memref<8x1xf32, #tpu.memory_space<vmem>>, vector<8x1xf32>
    %cst_111 = arith.constant 0.000000e+00 : f32
    %226 = vector.broadcast %cst_111 : f32 to vector<8x1xf32>
    %227 = arith.select %208, %194, %226 : vector<8x1xi1>, vector<8x1xf32>
    %228 = arith.addf %225, %227 : vector<8x1xf32>
    %c0_112 = arith.constant 0 : index
    %c0_113 = arith.constant 0 : index
    %229 = vector.load %arg6[%c0_112, %c0_113] : memref<8x1xf32, #tpu.memory_space<vmem>>, vector<8x1xf32>
    tpu.vector_store %arg6[%c0_112, %c0_113], %228 {strides = array<i32>} : memref<8x1xf32, #tpu.memory_space<vmem>>, vector<8x1xf32>,
    %c0_114 = arith.constant 0 : index
    %c0_115 = arith.constant 0 : index
    %230 = vector.load %arg4[%c0_114, %c0_115] : memref<8x1xf32, #tpu.memory_space<vmem>>, vector<8x1xf32>
    tpu.vector_store %arg4[%c0_114, %c0_115], %213 {strides = array<i32>} : memref<8x1xf32, #tpu.memory_space<vmem>>, vector<8x1xf32>,
    %c8_i32_116 = arith.constant 8 : i32
    %231 = arith.muli %arg0, %c8_i32_116 : i32
    %c5_i32 = arith.constant 5 : i32
    %232 = arith.addi %231, %c5_i32 : i32
    %c5 = arith.constant 5 : index
    %c0_117 = arith.constant 0 : index
    %c0_118 = arith.constant 0 : index
    %233 = vector.load %arg2[%c5, %c0_117, %c0_118] : memref<8x16x32xf32, #tpu.memory_space<vmem>>, vector<1x16x32xf32>
    %234 = vector.shape_cast %233 : vector<1x16x32xf32> to vector<16x32xf32>
    %235 = arith.truncf %234 : vector<16x32xf32> to vector<16x32xbf16>
    %cst_119 = arith.constant dense<0.000000e+00> : vector<8x16xf32>
    %236 = tpu.matmul %4, %235, %cst_119 {dimension_numbers = #tpu.dot_dimension_numbers<[1], [1], [0], [0], [0, 0, 1, 0], [], []>} : vector<8x32xbf16>, vector<16x32xbf16>, vector<8x16xf32> -> vector<8x16xf32>
    %237 = tpu.iota {dimensions = array<i32: 1>} : vector<8x16xi32>
    %cst_120 = arith.constant dense<0xFF800000> : vector<8xf32>
    %238 = vector.multi_reduction <maximumf>, %236, %cst_120 [1] : vector<8x16xf32> to vector<8xf32>
    %239 = vector.shape_cast %238 : vector<8xf32> to vector<8x1xf32>
    %240 = vector.broadcast %239 : vector<8x1xf32> to vector<8x16xf32>
    %241 = arith.cmpf oeq, %236, %240 : vector<8x16xf32>
    %c16_i32_121 = arith.constant 16 : i32
    %242 = vector.broadcast %c16_i32_121 : i32 to vector<8x16xi32>
    %243 = arith.select %241, %237, %242 : vector<8x16xi1>, vector<8x16xi32>
    %cst_122 = arith.constant dense<2147483647> : vector<8xi32>
    %244 = vector.multi_reduction <minsi>, %243, %cst_122 [1] : vector<8x16xi32> to vector<8xi32>
    %245 = vector.shape_cast %244 : vector<8xi32> to vector<8x1xi32>
    %246 = vector.broadcast %245 : vector<8x1xi32> to vector<8x16xi32>
    %247 = arith.cmpi eq, %237, %246 : vector<8x16xi32>
    %cst_123 = arith.constant 0xFF800000 : f32
    %248 = vector.broadcast %cst_123 : f32 to vector<8x16xf32>
    %249 = arith.select %247, %248, %236 : vector<8x16xi1>, vector<8x16xf32>
    %cst_124 = arith.constant dense<0xFF800000> : vector<8xf32>
    %250 = vector.multi_reduction <maximumf>, %249, %cst_124 [1] : vector<8x16xf32> to vector<8xf32>
    %251 = vector.shape_cast %250 : vector<8xf32> to vector<8x1xf32>
    %252 = vector.broadcast %232 : i32 to vector<8x1xi32>
    %253 = arith.cmpi eq, %5, %252 : vector<8x1xi32>
    %cst_125 = arith.constant 0xFF800000 : f32
    %254 = vector.broadcast %cst_125 : f32 to vector<8x1xf32>
    %255 = arith.select %253, %254, %251 : vector<8x1xi1>, vector<8x1xf32>
    %c0_126 = arith.constant 0 : index
    %c0_127 = arith.constant 0 : index
    %256 = vector.load %arg4[%c0_126, %c0_127] : memref<8x1xf32, #tpu.memory_space<vmem>>, vector<8x1xf32>
    %257 = arith.maximumf %239, %255 : vector<8x1xf32>
    %258 = arith.maximumf %256, %257 : vector<8x1xf32>
    %c0_128 = arith.constant 0 : index
    %c0_129 = arith.constant 0 : index
    %259 = vector.load %arg5[%c0_128, %c0_129] : memref<8x1xf32, #tpu.memory_space<vmem>>, vector<8x1xf32>
    %260 = arith.subf %256, %258 : vector<8x1xf32>
    %261 = math.exp %260 : vector<8x1xf32>
    %262 = arith.mulf %259, %261 : vector<8x1xf32>
    %263 = arith.subf %239, %258 : vector<8x1xf32>
    %264 = math.exp %263 : vector<8x1xf32>
    %265 = arith.addf %262, %264 : vector<8x1xf32>
    %266 = arith.subf %255, %258 : vector<8x1xf32>
    %267 = math.exp %266 : vector<8x1xf32>
    %268 = arith.addf %265, %267 : vector<8x1xf32>
    %c0_130 = arith.constant 0 : index
    %c0_131 = arith.constant 0 : index
    %269 = vector.load %arg5[%c0_130, %c0_131] : memref<8x1xf32, #tpu.memory_space<vmem>>, vector<8x1xf32>
    tpu.vector_store %arg5[%c0_130, %c0_131], %268 {strides = array<i32>} : memref<8x1xf32, #tpu.memory_space<vmem>>, vector<8x1xf32>,
    %c0_132 = arith.constant 0 : index
    %c0_133 = arith.constant 0 : index
    %270 = vector.load %arg6[%c0_132, %c0_133] : memref<8x1xf32, #tpu.memory_space<vmem>>, vector<8x1xf32>
    %cst_134 = arith.constant 0.000000e+00 : f32
    %271 = vector.broadcast %cst_134 : f32 to vector<8x1xf32>
    %272 = arith.select %253, %239, %271 : vector<8x1xi1>, vector<8x1xf32>
    %273 = arith.addf %270, %272 : vector<8x1xf32>
    %c0_135 = arith.constant 0 : index
    %c0_136 = arith.constant 0 : index
    %274 = vector.load %arg6[%c0_135, %c0_136] : memref<8x1xf32, #tpu.memory_space<vmem>>, vector<8x1xf32>
    tpu.vector_store %arg6[%c0_135, %c0_136], %273 {strides = array<i32>} : memref<8x1xf32, #tpu.memory_space<vmem>>, vector<8x1xf32>,
    %c0_137 = arith.constant 0 : index
    %c0_138 = arith.constant 0 : index
    %275 = vector.load %arg4[%c0_137, %c0_138] : memref<8x1xf32, #tpu.memory_space<vmem>>, vector<8x1xf32>
    tpu.vector_store %arg4[%c0_137, %c0_138], %258 {strides = array<i32>} : memref<8x1xf32, #tpu.memory_space<vmem>>, vector<8x1xf32>,
    %c8_i32_139 = arith.constant 8 : i32
    %276 = arith.muli %arg0, %c8_i32_139 : i32
    %c6_i32 = arith.constant 6 : i32
    %277 = arith.addi %276, %c6_i32 : i32
    %c6 = arith.constant 6 : index
    %c0_140 = arith.constant 0 : index
    %c0_141 = arith.constant 0 : index
    %278 = vector.load %arg2[%c6, %c0_140, %c0_141] : memref<8x16x32xf32, #tpu.memory_space<vmem>>, vector<1x16x32xf32>
    %279 = vector.shape_cast %278 : vector<1x16x32xf32> to vector<16x32xf32>
    %280 = arith.truncf %279 : vector<16x32xf32> to vector<16x32xbf16>
    %cst_142 = arith.constant dense<0.000000e+00> : vector<8x16xf32>
    %281 = tpu.matmul %4, %280, %cst_142 {dimension_numbers = #tpu.dot_dimension_numbers<[1], [1], [0], [0], [0, 0, 1, 0], [], []>} : vector<8x32xbf16>, vector<16x32xbf16>, vector<8x16xf32> -> vector<8x16xf32>
    %282 = tpu.iota {dimensions = array<i32: 1>} : vector<8x16xi32>
    %cst_143 = arith.constant dense<0xFF800000> : vector<8xf32>
    %283 = vector.multi_reduction <maximumf>, %281, %cst_143 [1] : vector<8x16xf32> to vector<8xf32>
    %284 = vector.shape_cast %283 : vector<8xf32> to vector<8x1xf32>
    %285 = vector.broadcast %284 : vector<8x1xf32> to vector<8x16xf32>
    %286 = arith.cmpf oeq, %281, %285 : vector<8x16xf32>
    %c16_i32_144 = arith.constant 16 : i32
    %287 = vector.broadcast %c16_i32_144 : i32 to vector<8x16xi32>
    %288 = arith.select %286, %282, %287 : vector<8x16xi1>, vector<8x16xi32>
    %cst_145 = arith.constant dense<2147483647> : vector<8xi32>
    %289 = vector.multi_reduction <minsi>, %288, %cst_145 [1] : vector<8x16xi32> to vector<8xi32>
    %290 = vector.shape_cast %289 : vector<8xi32> to vector<8x1xi32>
    %291 = vector.broadcast %290 : vector<8x1xi32> to vector<8x16xi32>
    %292 = arith.cmpi eq, %282, %291 : vector<8x16xi32>
    %cst_146 = arith.constant 0xFF800000 : f32
    %293 = vector.broadcast %cst_146 : f32 to vector<8x16xf32>
    %294 = arith.select %292, %293, %281 : vector<8x16xi1>, vector<8x16xf32>
    %cst_147 = arith.constant dense<0xFF800000> : vector<8xf32>
    %295 = vector.multi_reduction <maximumf>, %294, %cst_147 [1] : vector<8x16xf32> to vector<8xf32>
    %296 = vector.shape_cast %295 : vector<8xf32> to vector<8x1xf32>
    %297 = vector.broadcast %277 : i32 to vector<8x1xi32>
    %298 = arith.cmpi eq, %5, %297 : vector<8x1xi32>
    %cst_148 = arith.constant 0xFF800000 : f32
    %299 = vector.broadcast %cst_148 : f32 to vector<8x1xf32>
    %300 = arith.select %298, %299, %296 : vector<8x1xi1>, vector<8x1xf32>
    %c0_149 = arith.constant 0 : index
    %c0_150 = arith.constant 0 : index
    %301 = vector.load %arg4[%c0_149, %c0_150] : memref<8x1xf32, #tpu.memory_space<vmem>>, vector<8x1xf32>
    %302 = arith.maximumf %284, %300 : vector<8x1xf32>
    %303 = arith.maximumf %301, %302 : vector<8x1xf32>
    %c0_151 = arith.constant 0 : index
    %c0_152 = arith.constant 0 : index
    %304 = vector.load %arg5[%c0_151, %c0_152] : memref<8x1xf32, #tpu.memory_space<vmem>>, vector<8x1xf32>
    %305 = arith.subf %301, %303 : vector<8x1xf32>
    %306 = math.exp %305 : vector<8x1xf32>
    %307 = arith.mulf %304, %306 : vector<8x1xf32>
    %308 = arith.subf %284, %303 : vector<8x1xf32>
    %309 = math.exp %308 : vector<8x1xf32>
    %310 = arith.addf %307, %309 : vector<8x1xf32>
    %311 = arith.subf %300, %303 : vector<8x1xf32>
    %312 = math.exp %311 : vector<8x1xf32>
    %313 = arith.addf %310, %312 : vector<8x1xf32>
    %c0_153 = arith.constant 0 : index
    %c0_154 = arith.constant 0 : index
    %314 = vector.load %arg5[%c0_153, %c0_154] : memref<8x1xf32, #tpu.memory_space<vmem>>, vector<8x1xf32>
    tpu.vector_store %arg5[%c0_153, %c0_154], %313 {strides = array<i32>} : memref<8x1xf32, #tpu.memory_space<vmem>>, vector<8x1xf32>,
    %c0_155 = arith.constant 0 : index
    %c0_156 = arith.constant 0 : index
    %315 = vector.load %arg6[%c0_155, %c0_156] : memref<8x1xf32, #tpu.memory_space<vmem>>, vector<8x1xf32>
    %cst_157 = arith.constant 0.000000e+00 : f32
    %316 = vector.broadcast %cst_157 : f32 to vector<8x1xf32>
    %317 = arith.select %298, %284, %316 : vector<8x1xi1>, vector<8x1xf32>
    %318 = arith.addf %315, %317 : vector<8x1xf32>
    %c0_158 = arith.constant 0 : index
    %c0_159 = arith.constant 0 : index
    %319 = vector.load %arg6[%c0_158, %c0_159] : memref<8x1xf32, #tpu.memory_space<vmem>>, vector<8x1xf32>
    tpu.vector_store %arg6[%c0_158, %c0_159], %318 {strides = array<i32>} : memref<8x1xf32, #tpu.memory_space<vmem>>, vector<8x1xf32>,
    %c0_160 = arith.constant 0 : index
    %c0_161 = arith.constant 0 : index
    %320 = vector.load %arg4[%c0_160, %c0_161] : memref<8x1xf32, #tpu.memory_space<vmem>>, vector<8x1xf32>
    tpu.vector_store %arg4[%c0_160, %c0_161], %303 {strides = array<i32>} : memref<8x1xf32, #tpu.memory_space<vmem>>, vector<8x1xf32>,
    %c8_i32_162 = arith.constant 8 : i32
    %321 = arith.muli %arg0, %c8_i32_162 : i32
    %c7_i32 = arith.constant 7 : i32
    %322 = arith.addi %321, %c7_i32 : i32
    %c7 = arith.constant 7 : index
    %c0_163 = arith.constant 0 : index
    %c0_164 = arith.constant 0 : index
    %323 = vector.load %arg2[%c7, %c0_163, %c0_164] : memref<8x16x32xf32, #tpu.memory_space<vmem>>, vector<1x16x32xf32>
    %324 = vector.shape_cast %323 : vector<1x16x32xf32> to vector<16x32xf32>
    %325 = arith.truncf %324 : vector<16x32xf32> to vector<16x32xbf16>
    %cst_165 = arith.constant dense<0.000000e+00> : vector<8x16xf32>
    %326 = tpu.matmul %4, %325, %cst_165 {dimension_numbers = #tpu.dot_dimension_numbers<[1], [1], [0], [0], [0, 0, 1, 0], [], []>} : vector<8x32xbf16>, vector<16x32xbf16>, vector<8x16xf32> -> vector<8x16xf32>
    %327 = tpu.iota {dimensions = array<i32: 1>} : vector<8x16xi32>
    %cst_166 = arith.constant dense<0xFF800000> : vector<8xf32>
    %328 = vector.multi_reduction <maximumf>, %326, %cst_166 [1] : vector<8x16xf32> to vector<8xf32>
    %329 = vector.shape_cast %328 : vector<8xf32> to vector<8x1xf32>
    %330 = vector.broadcast %329 : vector<8x1xf32> to vector<8x16xf32>
    %331 = arith.cmpf oeq, %326, %330 : vector<8x16xf32>
    %c16_i32_167 = arith.constant 16 : i32
    %332 = vector.broadcast %c16_i32_167 : i32 to vector<8x16xi32>
    %333 = arith.select %331, %327, %332 : vector<8x16xi1>, vector<8x16xi32>
    %cst_168 = arith.constant dense<2147483647> : vector<8xi32>
    %334 = vector.multi_reduction <minsi>, %333, %cst_168 [1] : vector<8x16xi32> to vector<8xi32>
    %335 = vector.shape_cast %334 : vector<8xi32> to vector<8x1xi32>
    %336 = vector.broadcast %335 : vector<8x1xi32> to vector<8x16xi32>
    %337 = arith.cmpi eq, %327, %336 : vector<8x16xi32>
    %cst_169 = arith.constant 0xFF800000 : f32
    %338 = vector.broadcast %cst_169 : f32 to vector<8x16xf32>
    %339 = arith.select %337, %338, %326 : vector<8x16xi1>, vector<8x16xf32>
    %cst_170 = arith.constant dense<0xFF800000> : vector<8xf32>
    %340 = vector.multi_reduction <maximumf>, %339, %cst_170 [1] : vector<8x16xf32> to vector<8xf32>
    %341 = vector.shape_cast %340 : vector<8xf32> to vector<8x1xf32>
    %342 = vector.broadcast %322 : i32 to vector<8x1xi32>
    %343 = arith.cmpi eq, %5, %342 : vector<8x1xi32>
    %cst_171 = arith.constant 0xFF800000 : f32
    %344 = vector.broadcast %cst_171 : f32 to vector<8x1xf32>
    %345 = arith.select %343, %344, %341 : vector<8x1xi1>, vector<8x1xf32>
    %c0_172 = arith.constant 0 : index
    %c0_173 = arith.constant 0 : index
    %346 = vector.load %arg4[%c0_172, %c0_173] : memref<8x1xf32, #tpu.memory_space<vmem>>, vector<8x1xf32>
    %347 = arith.maximumf %329, %345 : vector<8x1xf32>
    %348 = arith.maximumf %346, %347 : vector<8x1xf32>
    %c0_174 = arith.constant 0 : index
    %c0_175 = arith.constant 0 : index
    %349 = vector.load %arg5[%c0_174, %c0_175] : memref<8x1xf32, #tpu.memory_space<vmem>>, vector<8x1xf32>
    %350 = arith.subf %346, %348 : vector<8x1xf32>
    %351 = math.exp %350 : vector<8x1xf32>
    %352 = arith.mulf %349, %351 : vector<8x1xf32>
    %353 = arith.subf %329, %348 : vector<8x1xf32>
    %354 = math.exp %353 : vector<8x1xf32>
    %355 = arith.addf %352, %354 : vector<8x1xf32>
    %356 = arith.subf %345, %348 : vector<8x1xf32>
    %357 = math.exp %356 : vector<8x1xf32>
    %358 = arith.addf %355, %357 : vector<8x1xf32>
    %c0_176 = arith.constant 0 : index
    %c0_177 = arith.constant 0 : index
    %359 = vector.load %arg5[%c0_176, %c0_177] : memref<8x1xf32, #tpu.memory_space<vmem>>, vector<8x1xf32>
    tpu.vector_store %arg5[%c0_176, %c0_177], %358 {strides = array<i32>} : memref<8x1xf32, #tpu.memory_space<vmem>>, vector<8x1xf32>,
    %c0_178 = arith.constant 0 : index
    %c0_179 = arith.constant 0 : index
    %360 = vector.load %arg6[%c0_178, %c0_179] : memref<8x1xf32, #tpu.memory_space<vmem>>, vector<8x1xf32>
    %cst_180 = arith.constant 0.000000e+00 : f32
    %361 = vector.broadcast %cst_180 : f32 to vector<8x1xf32>
    %362 = arith.select %343, %329, %361 : vector<8x1xi1>, vector<8x1xf32>
    %363 = arith.addf %360, %362 : vector<8x1xf32>
    %c0_181 = arith.constant 0 : index
    %c0_182 = arith.constant 0 : index
    %364 = vector.load %arg6[%c0_181, %c0_182] : memref<8x1xf32, #tpu.memory_space<vmem>>, vector<8x1xf32>
    tpu.vector_store %arg6[%c0_181, %c0_182], %363 {strides = array<i32>} : memref<8x1xf32, #tpu.memory_space<vmem>>, vector<8x1xf32>,
    %c0_183 = arith.constant 0 : index
    %c0_184 = arith.constant 0 : index
    %365 = vector.load %arg4[%c0_183, %c0_184] : memref<8x1xf32, #tpu.memory_space<vmem>>, vector<8x1xf32>
    tpu.vector_store %arg4[%c0_183, %c0_184], %348 {strides = array<i32>} : memref<8x1xf32, #tpu.memory_space<vmem>>, vector<8x1xf32>,
    %c0_i32_185 = arith.constant 0 : i32
    %366 = arith.cmpi eq, %arg0, %c0_i32_185 : i32
    %367 = arith.extui %366 : i1 to i32
    %c0_i32_186 = arith.constant 0 : i32
    %368 = arith.cmpi ne, %367, %c0_i32_186 : i32
    scf.if %368 {
      %c0_187 = arith.constant 0 : index
      %c0_188 = arith.constant 0 : index
      %369 = vector.load %arg4[%c0_187, %c0_188] : memref<8x1xf32, #tpu.memory_space<vmem>>, vector<8x1xf32>
      %c0_189 = arith.constant 0 : index
      %c0_190 = arith.constant 0 : index
      %370 = vector.load %arg5[%c0_189, %c0_190] : memref<8x1xf32, #tpu.memory_space<vmem>>, vector<8x1xf32>
      %371 = math.log %370 : vector<8x1xf32>
      %372 = arith.addf %369, %371 : vector<8x1xf32>
      %c0_191 = arith.constant 0 : index
      %c0_192 = arith.constant 0 : index
      %373 = vector.load %arg6[%c0_191, %c0_192] : memref<8x1xf32, #tpu.memory_space<vmem>>, vector<8x1xf32>
      %374 = arith.subf %372, %373 : vector<8x1xf32>
      %cst_193 = arith.constant dense<0.000000e+00> : vector<1xf32>
      %375 = vector.multi_reduction <add>, %374, %cst_193 [0] : vector<8x1xf32> to vector<1xf32>
      %376 = vector.shape_cast %375 : vector<1xf32> to vector<1x1xf32>
      %cst_194 = arith.constant 1.250000e-01 : f32
      %377 = vector.broadcast %cst_194 : f32 to vector<1x1xf32>
      %378 = arith.mulf %376, %377 : vector<1x1xf32>
      %c0_195 = arith.constant 0 : index
      %c0_196 = arith.constant 0 : index
      %379 = vector.load %arg3[%c0_195, %c0_196] : memref<1x1xf32, #tpu.memory_space<vmem>>, vector<1x1xf32>
      tpu.vector_store %arg3[%c0_195, %c0_196], %378 {strides = array<i32>} : memref<1x1xf32, #tpu.memory_space<vmem>>, vector<1x1xf32>,
    } else {
    }
    return
  }
  func.func @transform_0(%arg0: i32) -> (i32, i32) {
    %c0_i32 = arith.constant 0 : i32
    %c0_i32_0 = arith.constant 0 : i32
    %c0_i32_1 = arith.constant 0 : i32
    return %c0_i32, %c0_i32_0 : i32, i32
  }
  func.func @transform_1(%arg0: i32) -> (i32, i32, i32) {
    %c0_i32 = arith.constant 0 : i32
    %c0_i32_0 = arith.constant 0 : i32
    %c0_i32_1 = arith.constant 0 : i32
    return %arg0, %c0_i32, %c0_i32_0 : i32, i32, i32
  }
  func.func @transform_2(%arg0: i32) -> (i32, i32) {
    %c0_i32 = arith.constant 0 : i32
    %c0_i32_0 = arith.constant 0 : i32
    %c0_i32_1 = arith.constant 0 : i32
    return %c0_i32, %c0_i32_0 : i32, i32
  }
}

</mosaic_0001>

<llo_original>
// kernel: tpu_custom_call.1
$region0: #{tpu_custom_call.1}
  #allocation0 [shape = 'u32[]', space=smem, size = 0x4, offset = 0x4, fixed_abs, tag = 'smem constant byte address 0x4 - core index']
  #allocation1 [shape = 'u32[72,128]{1,0:T(1,128)}', space=vmem, size = 0x9000, scoped, tag = 'internal scratch']
  #allocation2 [shape = 'f32[8,1]{1,0:T(8,128)}', space=vmem, size = 0x1000, scoped, tag = 'scratch operand']
  #allocation3 [shape = 'f32[8,1]{1,0:T(8,128)}', space=vmem, size = 0x1000, scoped, tag = 'scratch operand']
  #allocation4 [shape = 'f32[8,1]{1,0:T(8,128)}', space=vmem, size = 0x1000, scoped, tag = 'scratch operand']
  %s0 = inlined_call_operand.hbm [shape: f32[8,32], index: 0, kind: input, shape index: {}]
  %s1 = inlined_call_operand.hbm [shape: f32[8,16,32], index: 1, kind: input, shape index: {}]
  %s2 = inlined_call_operand.hbm [shape: f32[1,1], index: 2, kind: output, shape index: {}]
  %s3 = sld [smem:[#allocation0]]
  $region34: #{tpu_custom_call.1} parent=0
    _
  %s5 = ssub.s32 1, %s3
  %s6 = scalar_select 0, %s5, %s3
  $region1: #{tpu_custom_call.1} parent=0
    #allocation5 [shape = 'u8[4096]{0}', space=vmem, size = 0x1000, scoped, tag = 'input window, operand 0, single buffered']
    #allocation6 [shape = 's32[1]{0}', space=sflag, size = 0x4, scoped, tag = 'scoped memory for tpu_custom_call.1']
    #allocation7 [shape = 's32[1]{0}', space=sflag, size = 0x4, scoped, tag = 'scoped memory for tpu_custom_call.1']
    #allocation8 [shape = 'u8[65536]{0}', space=vmem, size = 0x10000, scoped, tag = 'input window, operand 1, single buffered']
    #allocation9 [shape = 's32[1]{0}', space=sflag, size = 0x4, scoped, tag = 'scoped memory for tpu_custom_call.1']
    #allocation10 [shape = 'u8[512]{0}', space=vmem, size = 0x400, scoped, tag = 'output window, operand 0, single buffered']
    %7 = vsyncpa [#allocation6], 0
    %8 = vsyncpa [#allocation9], 0
    %9 = vsyncpa [#allocation7], 0
    // Predicated region
    $region2: #{tpu_custom_call.1} parent=1 // pred_check
      _
    $region3: #{tpu_custom_call.1} parent=1 // pred_check_branch
      %11 = sbr.rel (0) target = $region5
    $region4: #{tpu_custom_call.1} parent=1 // pred_region
      %13 = vsyncadd [#allocation6], 0
      %s15 = sshll.u32 %s0, 4
      %s16 = int_to_ptr.hbm [resolvable:$true] %s15
      %s17 = sshll.u32 [#allocation5], 4
      %s18 = int_to_ptr.vmem [resolvable:$true] %s17
      %20 = dma.hbm_to_vmem [thread:$0]  %s16, 128, %s18, [#allocation6]
    $region5: #{tpu_custom_call.1} parent=1 // pred_fallthru
      _
    // Predicated region
    $region6: #{tpu_custom_call.1} parent=1 // pred_check
      _
    $region7: #{tpu_custom_call.1} parent=1 // pred_check_branch
      %22 = sbr.rel (0) target = $region9
    $region8: #{tpu_custom_call.1} parent=1 // pred_region
      %24 = vsyncadd [#allocation9], 0
      %s25 = sshll.u32 %s1, 4
      %s26 = int_to_ptr.hbm [resolvable:$true] %s25
      %s27 = sshll.u32 [#allocation8], 4
      %s28 = int_to_ptr.vmem [resolvable:$true] %s27
      %33 = dma.hbm_to_vmem [thread:$0]  %s26, 2048, %s28, [#allocation9], 128, 128, 8
    $region9: #{tpu_custom_call.1} parent=1 // pred_fallthru
      _
    // Predicated region
    $region10: #{tpu_custom_call.1} parent=1 // pred_check
      _
    $region11: #{tpu_custom_call.1} parent=1 // pred_check_branch
      %35 = sbr.rel (0) target = $region13
    $region12: #{tpu_custom_call.1} parent=1 // pred_region
      %37 = dma.done [#allocation6], 128
    $region13: #{tpu_custom_call.1} parent=1 // pred_fallthru
      _
    // Predicated region
    $region14: #{tpu_custom_call.1} parent=1 // pred_check
      _
    $region15: #{tpu_custom_call.1} parent=1 // pred_check_branch
      %39 = sbr.rel (0) target = $region17
    $region16: #{tpu_custom_call.1} parent=1 // pred_region
      %41 = dma.done [#allocation9], 2048
    $region17: #{tpu_custom_call.1} parent=1 // pred_fallthru
      _
    %p43 = scmp.eq.s32.totalorder 0, 0
    // Predicated region
    $region18: #{tpu_custom_call.1} parent=1 // pred_check
      %p44 = pneg %p43
    $region19: #{tpu_custom_call.1} parent=1 // pred_check_branch
      %46 = sbr.rel (%p44) target = $region21
    $region20: #{tpu_custom_call.1} parent=1 // pred_region
      %vm47 = vcmask 7168
      %48 = vst.msk [vmem:[#allocation2] sm:$0xff] %vm47, -inf
      %49 = vst.msk [vmem:[#allocation3] sm:$0xff] %vm47, 0.0
      %50 = vst.msk [vmem:[#allocation4] sm:$0xff] %vm47, 0.0
    $region21: #{tpu_custom_call.1} parent=1 // pred_fallthru
      _
    %v51 = vld [vmem:[#allocation5] sm:$0xff]
    %v52 = vpack.c.bf16 %v51, %v51
    %v53 = vlaneseq
    %v54 = vshrl.u32 %v53, 7
    %s55 = smul.u32 0, 8
    %v56 = vld [vmem:[#allocation8] sm:$0xff]
    %v57 = vld [vmem:[#allocation8 + $0x8] sm:$0xff]
    %v58 = vpack.c.bf16 %v57, %v56
    %vm59 = vcmask 261120
    %v61 = vsel %vm59, %v52, 0
    %v64 = vsel %vm59, %v58, 0
    %66 = vmatpush.bf16.xpose.msra.mxu0 0
    %67 = vmatpush.bf16.xpose.msra.mxu0 0
    %68 = vmatpush.bf16.xpose.msra.mxu0 0
    %69 = vmatpush.bf16.xpose.msra.mxu0 0
    %70 = vmatpush.bf16.xpose.msra.mxu0 0
    %71 = vmatpush.bf16.xpose.msra.mxu0 0
    %72 = vmatpush.bf16.xpose.msra.mxu0 0
    %73 = vmatpush.bf16.xpose.msra.mxu0 %v64
    %74 = vmatmul.bf16.gmra.mxu0 %v61
    %v75 = vpop.f32.mrf.mxu0
    %v76 = vadd.f32 0.0, %v75
    %v77 = vpop.f32.mrf.mxu0
    %78 = vdwg.mxu0
    %v79 = vlaneseq
    %v80 = vand.u32 %v79, 127
    %vm81 = vcmask 130048
    %v82 = vsel %vm81, %v76, -inf
    %83 = vmax.xlane.f32.xlu0 %v82
    %v84 = vpop.xlane.xlu0 %83
    %vm85 = vcmp.eq.f32.partialorder %v76, %v84
    %v86 = vsel %vm85, %v80, 16
    %v87 = vsel %vm81, %v86, 2147483647
    %v88 = vand.u32 %v87, 65535
    %v89 = vshra.s32 %v87, 16
    %v90 = vcvt.s32.f32 %v88
    %v91 = vcvt.s32.f32 %v89
    %92 = vmin.xlane.f32.xlu0 %v91
    %v93 = vpop.xlane.xlu0 %92
    %vm94 = vcmp.eq.f32.partialorder %v91, %v93
    %v95 = vsel %vm94, %v90, inf
    %96 = vmin.xlane.f32.xlu0 %v95
    %v97 = vpop.xlane.xlu0 %96
    %v98 = vcvt.f32.s32 %v97
    %v99 = vcvt.f32.s32 %v93
    %v100 = vshll.u32 %v99, 16
    %v101 = vadd.s32 %v100, %v98
    %vm102 = vcmp.eq.s32.totalorder %v80, %v101
    %v103 = vsel %vm102, -inf, %v76
    %v104 = vsel %vm81, %v103, -inf
    %105 = vmax.xlane.f32.xlu0 %v104
    %v106 = vpop.xlane.xlu0 %105
    %v107 = vstv %s55
    %vm108 = vcmp.eq.s32.totalorder %v54, %v107
    %v109 = vsel %vm108, -inf, %v106
    %v110 = vld [vmem:[#allocation2] sm:$0xff]
    %v111 = vmax.f32 %v84, %v109
    %v112 = vmax.f32 %v110, %v111
    %v113 = vld [vmem:[#allocation3] sm:$0xff]
    %v114 = vsub.f32 %v110, %v112
    %v115 = vmul.f32 %v114, 1.442695
    %v116 = vpow.pop %v115
    %v117 = vmul.f32 %v113, %v116
    %v118 = vsub.f32 %v84, %v112
    %v119 = vmul.f32 %v118, 1.442695
    %v120 = vpow.pop %v119
    %v121 = vadd.f32 %v117, %v120
    %v122 = vsub.f32 %v109, %v112
    %v123 = vmul.f32 %v122, 1.442695
    %v124 = vpow.pop %v123
    %v125 = vadd.f32 %v121, %v124
    %vm126 = vcmask 7168
    %127 = vst.msk [vmem:[#allocation3] sm:$0xff] %vm126, %v125
    %v128 = vld [vmem:[#allocation4] sm:$0xff]
    %v129 = vsel %vm108, %v84, 0.0
    %v130 = vadd.f32 %v128, %v129
    %131 = vst.msk [vmem:[#allocation4] sm:$0xff] %vm126, %v130
    %132 = vst.msk [vmem:[#allocation2] sm:$0xff] %vm126, %v112
    %s133 = sadd.s32 %s55, 1
    %s134 = scalar_lea.vmem [#allocation8], 16
    %v135 = vld [vmem:[%s134] sm:$0xff]
    %v136 = vld [vmem:[%s134 + $0x8] sm:$0xff]
    %v137 = vpack.c.bf16 %v136, %v135
    %v139 = vsel %vm59, %v137, 0
    %141 = vmatpush.bf16.xpose.msra.mxu0 0
    %142 = vmatpush.bf16.xpose.msra.mxu0 0
    %143 = vmatpush.bf16.xpose.msra.mxu0 0
    %144 = vmatpush.bf16.xpose.msra.mxu0 0
    %145 = vmatpush.bf16.xpose.msra.mxu0 0
    %146 = vmatpush.bf16.xpose.msra.mxu0 0
    %147 = vmatpush.bf16.xpose.msra.mxu0 0
    %148 = vmatpush.bf16.xpose.msra.mxu0 %v139
    %149 = vmatmul.bf16.gmra.mxu0 %v61
    %v150 = vpop.f32.mrf.mxu0
    %v151 = vadd.f32 0.0, %v150
    %v152 = vpop.f32.mrf.mxu0
    %153 = vdwg.mxu0
    %v154 = vsel %vm81, %v151, -inf
    %155 = vmax.xlane.f32.xlu0 %v154
    %v156 = vpop.xlane.xlu0 %155
    %vm157 = vcmp.eq.f32.partialorder %v151, %v156
    %v158 = vsel %vm157, %v80, 16
    %v159 = vsel %vm81, %v158, 2147483647
    %v160 = vand.u32 %v159, 65535
    %v161 = vshra.s32 %v159, 16
    %v162 = vcvt.s32.f32 %v160
    %v163 = vcvt.s32.f32 %v161
    %164 = vmin.xlane.f32.xlu0 %v163
    %v165 = vpop.xlane.xlu0 %164
    %vm166 = vcmp.eq.f32.partialorder %v163, %v165
    %v167 = vsel %vm166, %v162, inf
    %168 = vmin.xlane.f32.xlu0 %v167
    %v169 = vpop.xlane.xlu0 %168
    %v170 = vcvt.f32.s32 %v169
    %v171 = vcvt.f32.s32 %v165
    %v172 = vshll.u32 %v171, 16
    %v173 = vadd.s32 %v172, %v170
    %vm174 = vcmp.eq.s32.totalorder %v80, %v173
    %v175 = vsel %vm174, -inf, %v151
    %v176 = vsel %vm81, %v175, -inf
    %177 = vmax.xlane.f32.xlu0 %v176
    %v178 = vpop.xlane.xlu0 %177
    %v179 = vstv %s133
    %vm180 = vcmp.eq.s32.totalorder %v54, %v179
    %v181 = vsel %vm180, -inf, %v178
    %v182 = vld [vmem:[#allocation2] sm:$0xff]
    %v183 = vmax.f32 %v156, %v181
    %v184 = vmax.f32 %v182, %v183
    %v185 = vld [vmem:[#allocation3] sm:$0xff]
    %v186 = vsub.f32 %v182, %v184
    %v187 = vmul.f32 %v186, 1.442695
    %v188 = vpow.pop %v187
    %v189 = vmul.f32 %v185, %v188
    %v190 = vsub.f32 %v156, %v184
    %v191 = vmul.f32 %v190, 1.442695
    %v192 = vpow.pop %v191
    %v193 = vadd.f32 %v189, %v192
    %v194 = vsub.f32 %v181, %v184
    %v195 = vmul.f32 %v194, 1.442695
    %v196 = vpow.pop %v195
    %v197 = vadd.f32 %v193, %v196
    %198 = vst.msk [vmem:[#allocation3] sm:$0xff] %vm126, %v197
    %v199 = vld [vmem:[#allocation4] sm:$0xff]
    %v200 = vsel %vm180, %v156, 0.0
    %v201 = vadd.f32 %v199, %v200
    %202 = vst.msk [vmem:[#allocation4] sm:$0xff] %vm126, %v201
    %203 = vst.msk [vmem:[#allocation2] sm:$0xff] %vm126, %v184
    %s204 = sadd.s32 %s55, 2
    %s205 = scalar_lea.vmem [#allocation8], 32
    %v206 = vld [vmem:[%s205] sm:$0xff]
    %v207 = vld [vmem:[%s205 + $0x8] sm:$0xff]
    %v208 = vpack.c.bf16 %v207, %v206
    %v210 = vsel %vm59, %v208, 0
    %212 = vmatpush.bf16.xpose.msra.mxu0 0
    %213 = vmatpush.bf16.xpose.msra.mxu0 0
    %214 = vmatpush.bf16.xpose.msra.mxu0 0
    %215 = vmatpush.bf16.xpose.msra.mxu0 0
    %216 = vmatpush.bf16.xpose.msra.mxu0 0
    %217 = vmatpush.bf16.xpose.msra.mxu0 0
    %218 = vmatpush.bf16.xpose.msra.mxu0 0
    %219 = vmatpush.bf16.xpose.msra.mxu0 %v210
    %220 = vmatmul.bf16.gmra.mxu0 %v61
    %v221 = vpop.f32.mrf.mxu0
    %v222 = vadd.f32 0.0, %v221
    %v223 = vpop.f32.mrf.mxu0
    %224 = vdwg.mxu0
    %v225 = vsel %vm81, %v222, -inf
    %226 = vmax.xlane.f32.xlu0 %v225
    %v227 = vpop.xlane.xlu0 %226
    %vm228 = vcmp.eq.f32.partialorder %v222, %v227
    %v229 = vsel %vm228, %v80, 16
    %v230 = vsel %vm81, %v229, 2147483647
    %v231 = vand.u32 %v230, 65535
    %v232 = vshra.s32 %v230, 16
    %v233 = vcvt.s32.f32 %v231
    %v234 = vcvt.s32.f32 %v232
    %235 = vmin.xlane.f32.xlu0 %v234
    %v236 = vpop.xlane.xlu0 %235
    %vm237 = vcmp.eq.f32.partialorder %v234, %v236
    %v238 = vsel %vm237, %v233, inf
    %239 = vmin.xlane.f32.xlu0 %v238
    %v240 = vpop.xlane.xlu0 %239
    %v241 = vcvt.f32.s32 %v240
    %v242 = vcvt.f32.s32 %v236
    %v243 = vshll.u32 %v242, 16
    %v244 = vadd.s32 %v243, %v241
    %vm245 = vcmp.eq.s32.totalorder %v80, %v244
    %v246 = vsel %vm245, -inf, %v222
    %v247 = vsel %vm81, %v246, -inf
    %248 = vmax.xlane.f32.xlu0 %v247
    %v249 = vpop.xlane.xlu0 %248
    %v250 = vstv %s204
    %vm251 = vcmp.eq.s32.totalorder %v54, %v250
    %v252 = vsel %vm251, -inf, %v249
    %v253 = vld [vmem:[#allocation2] sm:$0xff]
    %v254 = vmax.f32 %v227, %v252
    %v255 = vmax.f32 %v253, %v254
    %v256 = vld [vmem:[#allocation3] sm:$0xff]
    %v257 = vsub.f32 %v253, %v255
    %v258 = vmul.f32 %v257, 1.442695
    %v259 = vpow.pop %v258
    %v260 = vmul.f32 %v256, %v259
    %v261 = vsub.f32 %v227, %v255
    %v262 = vmul.f32 %v261, 1.442695
    %v263 = vpow.pop %v262
    %v264 = vadd.f32 %v260, %v263
    %v265 = vsub.f32 %v252, %v255
    %v266 = vmul.f32 %v265, 1.442695
    %v267 = vpow.pop %v266
    %v268 = vadd.f32 %v264, %v267
    %269 = vst.msk [vmem:[#allocation3] sm:$0xff] %vm126, %v268
    %v270 = vld [vmem:[#allocation4] sm:$0xff]
    %v271 = vsel %vm251, %v227, 0.0
    %v272 = vadd.f32 %v270, %v271
    %273 = vst.msk [vmem:[#allocation4] sm:$0xff] %vm126, %v272
    %274 = vst.msk [vmem:[#allocation2] sm:$0xff] %vm126, %v255
    %s275 = sadd.s32 %s55, 3
    %s276 = scalar_lea.vmem [#allocation8], 48
    %v277 = vld [vmem:[%s276] sm:$0xff]
    %v278 = vld [vmem:[%s276 + $0x8] sm:$0xff]
    %v279 = vpack.c.bf16 %v278, %v277
    %v281 = vsel %vm59, %v279, 0
    %283 = vmatpush.bf16.xpose.msra.mxu0 0
    %284 = vmatpush.bf16.xpose.msra.mxu0 0
    %285 = vmatpush.bf16.xpose.msra.mxu0 0
    %286 = vmatpush.bf16.xpose.msra.mxu0 0
    %287 = vmatpush.bf16.xpose.msra.mxu0 0
    %288 = vmatpush.bf16.xpose.msra.mxu0 0
    %289 = vmatpush.bf16.xpose.msra.mxu0 0
    %290 = vmatpush.bf16.xpose.msra.mxu0 %v281
    %291 = vmatmul.bf16.gmra.mxu0 %v61
    %v292 = vpop.f32.mrf.mxu0
    %v293 = vadd.f32 0.0, %v292
    %v294 = vpop.f32.mrf.mxu0
    %295 = vdwg.mxu0
    %v296 = vsel %vm81, %v293, -inf
    %297 = vmax.xlane.f32.xlu0 %v296
    %v298 = vpop.xlane.xlu0 %297
    %vm299 = vcmp.eq.f32.partialorder %v293, %v298
    %v300 = vsel %vm299, %v80, 16
    %v301 = vsel %vm81, %v300, 2147483647
    %v302 = vand.u32 %v301, 65535
    %v303 = vshra.s32 %v301, 16
    %v304 = vcvt.s32.f32 %v302
    %v305 = vcvt.s32.f32 %v303
    %306 = vmin.xlane.f32.xlu0 %v305
    %v307 = vpop.xlane.xlu0 %306
    %vm308 = vcmp.eq.f32.partialorder %v305, %v307
    %v309 = vsel %vm308, %v304, inf
    %310 = vmin.xlane.f32.xlu0 %v309
    %v311 = vpop.xlane.xlu0 %310
    %v312 = vcvt.f32.s32 %v311
    %v313 = vcvt.f32.s32 %v307
    %v314 = vshll.u32 %v313, 16
    %v315 = vadd.s32 %v314, %v312
    %vm316 = vcmp.eq.s32.totalorder %v80, %v315
    %v317 = vsel %vm316, -inf, %v293
    %v318 = vsel %vm81, %v317, -inf
    %319 = vmax.xlane.f32.xlu0 %v318
    %v320 = vpop.xlane.xlu0 %319
    %v321 = vstv %s275
    %vm322 = vcmp.eq.s32.totalorder %v54, %v321
    %v323 = vsel %vm322, -inf, %v320
    %v324 = vld [vmem:[#allocation2] sm:$0xff]
    %v325 = vmax.f32 %v298, %v323
    %v326 = vmax.f32 %v324, %v325
    %v327 = vld [vmem:[#allocation3] sm:$0xff]
    %v328 = vsub.f32 %v324, %v326
    %v329 = vmul.f32 %v328, 1.442695
    %v330 = vpow.pop %v329
    %v331 = vmul.f32 %v327, %v330
    %v332 = vsub.f32 %v298, %v326
    %v333 = vmul.f32 %v332, 1.442695
    %v334 = vpow.pop %v333
    %v335 = vadd.f32 %v331, %v334
    %v336 = vsub.f32 %v323, %v326
    %v337 = vmul.f32 %v336, 1.442695
    %v338 = vpow.pop %v337
    %v339 = vadd.f32 %v335, %v338
    %340 = vst.msk [vmem:[#allocation3] sm:$0xff] %vm126, %v339
    %v341 = vld [vmem:[#allocation4] sm:$0xff]
    %v342 = vsel %vm322, %v298, 0.0
    %v343 = vadd.f32 %v341, %v342
    %344 = vst.msk [vmem:[#allocation4] sm:$0xff] %vm126, %v343
    %345 = vst.msk [vmem:[#allocation2] sm:$0xff] %vm126, %v326
    %s346 = sadd.s32 %s55, 4
    %s347 = scalar_lea.vmem [#allocation8], 64
    %v348 = vld [vmem:[%s347] sm:$0xff]
    %v349 = vld [vmem:[%s347 + $0x8] sm:$0xff]
    %v350 = vpack.c.bf16 %v349, %v348
    %v352 = vsel %vm59, %v350, 0
    %354 = vmatpush.bf16.xpose.msra.mxu0 0
    %355 = vmatpush.bf16.xpose.msra.mxu0 0
    %356 = vmatpush.bf16.xpose.msra.mxu0 0
    %357 = vmatpush.bf16.xpose.msra.mxu0 0
    %358 = vmatpush.bf16.xpose.msra.mxu0 0
    %359 = vmatpush.bf16.xpose.msra.mxu0 0
    %360 = vmatpush.bf16.xpose.msra.mxu0 0
    %361 = vmatpush.bf16.xpose.msra.mxu0 %v352
    %362 = vmatmul.bf16.gmra.mxu0 %v61
    %v363 = vpop.f32.mrf.mxu0
    %v364 = vadd.f32 0.0, %v363
    %v365 = vpop.f32.mrf.mxu0
    %366 = vdwg.mxu0
    %v367 = vsel %vm81, %v364, -inf
    %368 = vmax.xlane.f32.xlu0 %v367
    %v369 = vpop.xlane.xlu0 %368
    %vm370 = vcmp.eq.f32.partialorder %v364, %v369
    %v371 = vsel %vm370, %v80, 16
    %v372 = vsel %vm81, %v371, 2147483647
    %v373 = vand.u32 %v372, 65535
    %v374 = vshra.s32 %v372, 16
    %v375 = vcvt.s32.f32 %v373
    %v376 = vcvt.s32.f32 %v374
    %377 = vmin.xlane.f32.xlu0 %v376
    %v378 = vpop.xlane.xlu0 %377
    %vm379 = vcmp.eq.f32.partialorder %v376, %v378
    %v380 = vsel %vm379, %v375, inf
    %381 = vmin.xlane.f32.xlu0 %v380
    %v382 = vpop.xlane.xlu0 %381
    %v383 = vcvt.f32.s32 %v382
    %v384 = vcvt.f32.s32 %v378
    %v385 = vshll.u32 %v384, 16
    %v386 = vadd.s32 %v385, %v383
    %vm387 = vcmp.eq.s32.totalorder %v80, %v386
    %v388 = vsel %vm387, -inf, %v364
    %v389 = vsel %vm81, %v388, -inf
    %390 = vmax.xlane.f32.xlu0 %v389
    %v391 = vpop.xlane.xlu0 %390
    %v392 = vstv %s346
    %vm393 = vcmp.eq.s32.totalorder %v54, %v392
    %v394 = vsel %vm393, -inf, %v391
    %v395 = vld [vmem:[#allocation2] sm:$0xff]
    %v396 = vmax.f32 %v369, %v394
    %v397 = vmax.f32 %v395, %v396
    %v398 = vld [vmem:[#allocation3] sm:$0xff]
    %v399 = vsub.f32 %v395, %v397
    %v400 = vmul.f32 %v399, 1.442695
    %v401 = vpow.pop %v400
    %v402 = vmul.f32 %v398, %v401
    %v403 = vsub.f32 %v369, %v397
    %v404 = vmul.f32 %v403, 1.442695
    %v405 = vpow.pop %v404
    %v406 = vadd.f32 %v402, %v405
    %v407 = vsub.f32 %v394, %v397
    %v408 = vmul.f32 %v407, 1.442695
    %v409 = vpow.pop %v408
    %v410 = vadd.f32 %v406, %v409
    %411 = vst.msk [vmem:[#allocation3] sm:$0xff] %vm126, %v410
    %v412 = vld [vmem:[#allocation4] sm:$0xff]
    %v413 = vsel %vm393, %v369, 0.0
    %v414 = vadd.f32 %v412, %v413
    %415 = vst.msk [vmem:[#allocation4] sm:$0xff] %vm126, %v414
    %416 = vst.msk [vmem:[#allocation2] sm:$0xff] %vm126, %v397
    %s417 = sadd.s32 %s55, 5
    %s418 = scalar_lea.vmem [#allocation8], 80
    %v419 = vld [vmem:[%s418] sm:$0xff]
    %v420 = vld [vmem:[%s418 + $0x8] sm:$0xff]
    %v421 = vpack.c.bf16 %v420, %v419
    %v423 = vsel %vm59, %v421, 0
    %425 = vmatpush.bf16.xpose.msra.mxu0 0
    %426 = vmatpush.bf16.xpose.msra.mxu0 0
    %427 = vmatpush.bf16.xpose.msra.mxu0 0
    %428 = vmatpush.bf16.xpose.msra.mxu0 0
    %429 = vmatpush.bf16.xpose.msra.mxu0 0
    %430 = vmatpush.bf16.xpose.msra.mxu0 0
    %431 = vmatpush.bf16.xpose.msra.mxu0 0
    %432 = vmatpush.bf16.xpose.msra.mxu0 %v423
    %433 = vmatmul.bf16.gmra.mxu0 %v61
    %v434 = vpop.f32.mrf.mxu0
    %v435 = vadd.f32 0.0, %v434
    %v436 = vpop.f32.mrf.mxu0
    %437 = vdwg.mxu0
    %v438 = vsel %vm81, %v435, -inf
    %439 = vmax.xlane.f32.xlu0 %v438
    %v440 = vpop.xlane.xlu0 %439
    %vm441 = vcmp.eq.f32.partialorder %v435, %v440
    %v442 = vsel %vm441, %v80, 16
    %v443 = vsel %vm81, %v442, 2147483647
    %v444 = vand.u32 %v443, 65535
    %v445 = vshra.s32 %v443, 16
    %v446 = vcvt.s32.f32 %v444
    %v447 = vcvt.s32.f32 %v445
    %448 = vmin.xlane.f32.xlu0 %v447
    %v449 = vpop.xlane.xlu0 %448
    %vm450 = vcmp.eq.f32.partialorder %v447, %v449
    %v451 = vsel %vm450, %v446, inf
    %452 = vmin.xlane.f32.xlu0 %v451
    %v453 = vpop.xlane.xlu0 %452
    %v454 = vcvt.f32.s32 %v453
    %v455 = vcvt.f32.s32 %v449
    %v456 = vshll.u32 %v455, 16
    %v457 = vadd.s32 %v456, %v454
    %vm458 = vcmp.eq.s32.totalorder %v80, %v457
    %v459 = vsel %vm458, -inf, %v435
    %v460 = vsel %vm81, %v459, -inf
    %461 = vmax.xlane.f32.xlu0 %v460
    %v462 = vpop.xlane.xlu0 %461
    %v463 = vstv %s417
    %vm464 = vcmp.eq.s32.totalorder %v54, %v463
    %v465 = vsel %vm464, -inf, %v462
    %v466 = vld [vmem:[#allocation2] sm:$0xff]
    %v467 = vmax.f32 %v440, %v465
    %v468 = vmax.f32 %v466, %v467
    %v469 = vld [vmem:[#allocation3] sm:$0xff]
    %v470 = vsub.f32 %v466, %v468
    %v471 = vmul.f32 %v470, 1.442695
    %v472 = vpow.pop %v471
    %v473 = vmul.f32 %v469, %v472
    %v474 = vsub.f32 %v440, %v468
    %v475 = vmul.f32 %v474, 1.442695
    %v476 = vpow.pop %v475
    %v477 = vadd.f32 %v473, %v476
    %v478 = vsub.f32 %v465, %v468
    %v479 = vmul.f32 %v478, 1.442695
    %v480 = vpow.pop %v479
    %v481 = vadd.f32 %v477, %v480
    %482 = vst.msk [vmem:[#allocation3] sm:$0xff] %vm126, %v481
    %v483 = vld [vmem:[#allocation4] sm:$0xff]
    %v484 = vsel %vm464, %v440, 0.0
    %v485 = vadd.f32 %v483, %v484
    %486 = vst.msk [vmem:[#allocation4] sm:$0xff] %vm126, %v485
    %487 = vst.msk [vmem:[#allocation2] sm:$0xff] %vm126, %v468
    %s488 = sadd.s32 %s55, 6
    %s489 = scalar_lea.vmem [#allocation8], 96
    %v490 = vld [vmem:[%s489] sm:$0xff]
    %v491 = vld [vmem:[%s489 + $0x8] sm:$0xff]
    %v492 = vpack.c.bf16 %v491, %v490
    %v494 = vsel %vm59, %v492, 0
    %496 = vmatpush.bf16.xpose.msra.mxu0 0
    %497 = vmatpush.bf16.xpose.msra.mxu0 0
    %498 = vmatpush.bf16.xpose.msra.mxu0 0
    %499 = vmatpush.bf16.xpose.msra.mxu0 0
    %500 = vmatpush.bf16.xpose.msra.mxu0 0
    %501 = vmatpush.bf16.xpose.msra.mxu0 0
    %502 = vmatpush.bf16.xpose.msra.mxu0 0
    %503 = vmatpush.bf16.xpose.msra.mxu0 %v494
    %504 = vmatmul.bf16.gmra.mxu0 %v61
    %v505 = vpop.f32.mrf.mxu0
    %v506 = vadd.f32 0.0, %v505
    %v507 = vpop.f32.mrf.mxu0
    %508 = vdwg.mxu0
    %v509 = vsel %vm81, %v506, -inf
    %510 = vmax.xlane.f32.xlu0 %v509
    %v511 = vpop.xlane.xlu0 %510
    %vm512 = vcmp.eq.f32.partialorder %v506, %v511
    %v513 = vsel %vm512, %v80, 16
    %v514 = vsel %vm81, %v513, 2147483647
    %v515 = vand.u32 %v514, 65535
    %v516 = vshra.s32 %v514, 16
    %v517 = vcvt.s32.f32 %v515
    %v518 = vcvt.s32.f32 %v516
    %519 = vmin.xlane.f32.xlu0 %v518
    %v520 = vpop.xlane.xlu0 %519
    %vm521 = vcmp.eq.f32.partialorder %v518, %v520
    %v522 = vsel %vm521, %v517, inf
    %523 = vmin.xlane.f32.xlu0 %v522
    %v524 = vpop.xlane.xlu0 %523
    %v525 = vcvt.f32.s32 %v524
    %v526 = vcvt.f32.s32 %v520
    %v527 = vshll.u32 %v526, 16
    %v528 = vadd.s32 %v527, %v525
    %vm529 = vcmp.eq.s32.totalorder %v80, %v528
    %v530 = vsel %vm529, -inf, %v506
    %v531 = vsel %vm81, %v530, -inf
    %532 = vmax.xlane.f32.xlu0 %v531
    %v533 = vpop.xlane.xlu0 %532
    %v534 = vstv %s488
    %vm535 = vcmp.eq.s32.totalorder %v54, %v534
    %v536 = vsel %vm535, -inf, %v533
    %v537 = vld [vmem:[#allocation2] sm:$0xff]
    %v538 = vmax.f32 %v511, %v536
    %v539 = vmax.f32 %v537, %v538
    %v540 = vld [vmem:[#allocation3] sm:$0xff]
    %v541 = vsub.f32 %v537, %v539
    %v542 = vmul.f32 %v541, 1.442695
    %v543 = vpow.pop %v542
    %v544 = vmul.f32 %v540, %v543
    %v545 = vsub.f32 %v511, %v539
    %v546 = vmul.f32 %v545, 1.442695
    %v547 = vpow.pop %v546
    %v548 = vadd.f32 %v544, %v547
    %v549 = vsub.f32 %v536, %v539
    %v550 = vmul.f32 %v549, 1.442695
    %v551 = vpow.pop %v550
    %v552 = vadd.f32 %v548, %v551
    %553 = vst.msk [vmem:[#allocation3] sm:$0xff] %vm126, %v552
    %v554 = vld [vmem:[#allocation4] sm:$0xff]
    %v555 = vsel %vm535, %v511, 0.0
    %v556 = vadd.f32 %v554, %v555
    %557 = vst.msk [vmem:[#allocation4] sm:$0xff] %vm126, %v556
    %558 = vst.msk [vmem:[#allocation2] sm:$0xff] %vm126, %v539
    %s559 = sadd.s32 %s55, 7
    %s560 = scalar_lea.vmem [#allocation8], 112
    %v561 = vld [vmem:[%s560] sm:$0xff]
    %v562 = vld [vmem:[%s560 + $0x8] sm:$0xff]
    %v563 = vpack.c.bf16 %v562, %v561
    %v565 = vsel %vm59, %v563, 0
    %567 = vmatpush.bf16.xpose.msra.mxu0 0
    %568 = vmatpush.bf16.xpose.msra.mxu0 0
    %569 = vmatpush.bf16.xpose.msra.mxu0 0
    %570 = vmatpush.bf16.xpose.msra.mxu0 0
    %571 = vmatpush.bf16.xpose.msra.mxu0 0
    %572 = vmatpush.bf16.xpose.msra.mxu0 0
    %573 = vmatpush.bf16.xpose.msra.mxu0 0
    %574 = vmatpush.bf16.xpose.msra.mxu0 %v565
    %575 = vmatmul.bf16.gmra.mxu0 %v61
    %v576 = vpop.f32.mrf.mxu0
    %v577 = vadd.f32 0.0, %v576
    %v578 = vpop.f32.mrf.mxu0
    %579 = vdwg.mxu0
    %v580 = vsel %vm81, %v577, -inf
    %581 = vmax.xlane.f32.xlu0 %v580
    %v582 = vpop.xlane.xlu0 %581
    %vm583 = vcmp.eq.f32.partialorder %v577, %v582
    %v584 = vsel %vm583, %v80, 16
    %v585 = vsel %vm81, %v584, 2147483647
    %v586 = vand.u32 %v585, 65535
    %v587 = vshra.s32 %v585, 16
    %v588 = vcvt.s32.f32 %v586
    %v589 = vcvt.s32.f32 %v587
    %590 = vmin.xlane.f32.xlu0 %v589
    %v591 = vpop.xlane.xlu0 %590
    %vm592 = vcmp.eq.f32.partialorder %v589, %v591
    %v593 = vsel %vm592, %v588, inf
    %594 = vmin.xlane.f32.xlu0 %v593
    %v595 = vpop.xlane.xlu0 %594
    %v596 = vcvt.f32.s32 %v595
    %v597 = vcvt.f32.s32 %v591
    %v598 = vshll.u32 %v597, 16
    %v599 = vadd.s32 %v598, %v596
    %vm600 = vcmp.eq.s32.totalorder %v80, %v599
    %v601 = vsel %vm600, -inf, %v577
    %v602 = vsel %vm81, %v601, -inf
    %603 = vmax.xlane.f32.xlu0 %v602
    %v604 = vpop.xlane.xlu0 %603
    %v605 = vstv %s559
    %vm606 = vcmp.eq.s32.totalorder %v54, %v605
    %v607 = vsel %vm606, -inf, %v604
    %v608 = vld [vmem:[#allocation2] sm:$0xff]
    %v609 = vmax.f32 %v582, %v607
    %v610 = vmax.f32 %v608, %v609
    %v611 = vld [vmem:[#allocation3] sm:$0xff]
    %v612 = vsub.f32 %v608, %v610
    %v613 = vmul.f32 %v612, 1.442695
    %v614 = vpow.pop %v613
    %v615 = vmul.f32 %v611, %v614
    %v616 = vsub.f32 %v582, %v610
    %v617 = vmul.f32 %v616, 1.442695
    %v618 = vpow.pop %v617
    %v619 = vadd.f32 %v615, %v618
    %v620 = vsub.f32 %v607, %v610
    %v621 = vmul.f32 %v620, 1.442695
    %v622 = vpow.pop %v621
    %v623 = vadd.f32 %v619, %v622
    %624 = vst.msk [vmem:[#allocation3] sm:$0xff] %vm126, %v623
    %v625 = vld [vmem:[#allocation4] sm:$0xff]
    %v626 = vsel %vm606, %v582, 0.0
    %v627 = vadd.f32 %v625, %v626
    %628 = vst.msk [vmem:[#allocation4] sm:$0xff] %vm126, %v627
    %629 = vst.msk [vmem:[#allocation2] sm:$0xff] %vm126, %v610
    // Predicated region
    $region22: #{tpu_custom_call.1} parent=1 // pred_check
      %p630 = pneg %p43
    $region23: #{tpu_custom_call.1} parent=1 // pred_check_branch
      %632 = sbr.rel (%p630) target = $region25
    $region24: #{tpu_custom_call.1} parent=1 // pred_region
      %v633 = vld [vmem:[#allocation2] sm:$0xff]
      %v634 = vld [vmem:[#allocation3] sm:$0xff]
      %v635 = vlog2.pop %v634
      %v636 = vmul.f32 %v635, 0.6931472
      %v637 = vadd.f32 %v633, %v636
      %v638 = vld [vmem:[#allocation4] sm:$0xff]
      %v639 = vsub.f32 %v637, %v638
      %v640 = vsel %vm126, %v639, 0.0
      %v641 = vrot.slane %v640, 4
      %v642 = vadd.f32 %v640, %v641
      %v643 = vrot.slane %v642, 2
      %v644 = vadd.f32 %v642, %v643
      %v645 = vrot.slane %v644, 1
      %v646 = vadd.f32 %v644, %v645
      %v647 = vmul.f32 %v646, 0.125
      %vm648 = vcmask 0
      %649 = vst.msk [vmem:[#allocation10] sm:$0x1] %vm648, %v647
    $region25: #{tpu_custom_call.1} parent=1 // pred_fallthru
      _
    // Predicated region
    $region26: #{tpu_custom_call.1} parent=1 // pred_check
      _
    $region27: #{tpu_custom_call.1} parent=1 // pred_check_branch
      %651 = sbr.rel (0) target = $region29
    $region28: #{tpu_custom_call.1} parent=1 // pred_region
      %653 = vsyncadd [#allocation7], 0
      %s655 = sshll.u32 [#allocation10], 4
      %s656 = int_to_ptr.vmem [resolvable:$true] %s655
      %s657 = sshll.u32 %s2, 4
      %s658 = int_to_ptr.hbm [resolvable:$true] %s657
      %660 = dma.vmem_to_hbm [thread:$0]  %s656, 16, %s658, [#allocation7]
    $region29: #{tpu_custom_call.1} parent=1 // pred_fallthru
      _
    // Predicated region
    $region30: #{tpu_custom_call.1} parent=1 // pred_check
      _
    $region31: #{tpu_custom_call.1} parent=1 // pred_check_branch
      %662 = sbr.rel (0) target = $region33
    $region32: #{tpu_custom_call.1} parent=1 // pred_region
      %664 = dma.done [#allocation7], 16
    $region33: #{tpu_custom_call.1} parent=1 // pred_fallthru
      _
    %665 = vsyncpa [#allocation6], 1
    %666 = vsyncpa [#allocation9], 1
    %667 = vsyncpa [#allocation7], 1

</llo_original>
